<compile_context>
chip_gen: v7x
topology: tpu7x:2x2x1
jax: 0.10.0
libtpu: 0.0.40
codegen_flags: <defaults>
</compile_context>

<pallas_src>
import jax
import jax.numpy as jnp
from jax.experimental import pallas as pl
from jax.experimental.pallas import tpu as pltpu


def _self_attn_kernel(gamma_ref, x_ref, wq_ref, bq_ref, wk_ref, bk_ref,
                      wv_ref, bv_ref, o_ref):
    xb = x_ref[...].astype(jnp.float32)                              # (C, N)

    # 1x1-conv projections, channel-major: (Cout, C) @ (C, N) -> (Cout, N)
    q = jnp.dot(wq_ref[...], xb, preferred_element_type=jnp.float32) + bq_ref[...]
    k = jnp.dot(wk_ref[...], xb, preferred_element_type=jnp.float32) + bk_ref[...]
    v = jnp.dot(wv_ref[...], xb, preferred_element_type=jnp.float32) + bv_ref[...]

    # energy[i, j] = sum_c q[c, i] * k[c, j]     -> (N, N)   (trans_A matmul)
    energy = jax.lax.dot_general(q, k, (((0,), (0,)), ((), ())),
                                 preferred_element_type=jnp.float32)

    # Row-wise softmax over the key axis (lanes), numerically stabilized.
    m = jnp.max(energy, axis=-1, keepdims=True)
    p = jnp.exp(energy - m)
    inv_l = pl.reciprocal(jnp.sum(p, axis=-1, keepdims=True), approx=True)
    attn = p * inv_l                                                 # (N, N)

    # out[c, i] = sum_j v[c, j] * attn[i, j]     -> (C, N)   (trans_B matmul)
    out = jax.lax.dot_general(v, attn, (((1,), (1,)), ((), ())),
                              preferred_element_type=jnp.float32)

    o_ref[...] = (gamma_ref[0, 0] * out + xb).astype(o_ref.dtype)


def self_attn(x, wq, bq, wk, bk, wv, bv, gamma):
    """Self_Attn forward.  x: (B, C, W, H) NCHW.  Returns (B, C, W, H)."""
    B, C, W, H = x.shape
    N = W * H
    Ck = wq.shape[0]

    # Channel-major per-pixel layout (B, C, N); pixel index = w*H + h, exactly
    # PyTorch's .view(B, C, W*H).  Reshapes here are free views (no transpose).
    x_cn = x.reshape(B, C, N)
    wq_f = wq.astype(jnp.float32)                  # (Ck, C)
    wk_f = wk.astype(jnp.float32)                  # (Ck, C)
    wv_f = wv.astype(jnp.float32)                  # (C, C)
    bq2 = bq.reshape(Ck, 1).astype(jnp.float32)
    bk2 = bk.reshape(Ck, 1).astype(jnp.float32)
    bv2 = bv.reshape(C, 1).astype(jnp.float32)
    gamma2d = jnp.asarray(gamma, jnp.float32).reshape(1, 1)

    # TODO(synk): for large W*H the full N x N attention matrix will not fit in
    # VMEM; a flash-style tiling over key blocks would be needed in that regime.
    out_cn = pl.pallas_call(
        _self_attn_kernel,
        out_shape=jax.ShapeDtypeStruct((B, C, N), x.dtype),
        grid_spec=pltpu.PrefetchScalarGridSpec(
            num_scalar_prefetch=0,
            grid=(B,),
            in_specs=[
                pl.BlockSpec(memory_space=pltpu.MemorySpace.SMEM),   # gamma (1,1)
                pl.BlockSpec((None, C, N), lambda b: (b, 0, 0)),     # x   -> (C, N)
                pl.BlockSpec((Ck, C), lambda b: (0, 0)),             # wq
                pl.BlockSpec((Ck, 1), lambda b: (0, 0)),             # bq
                pl.BlockSpec((Ck, C), lambda b: (0, 0)),             # wk
                pl.BlockSpec((Ck, 1), lambda b: (0, 0)),             # bk
                pl.BlockSpec((C, C), lambda b: (0, 0)),              # wv
                pl.BlockSpec((C, 1), lambda b: (0, 0)),              # bv
            ],
            out_specs=pl.BlockSpec((None, C, N), lambda b: (b, 0, 0)),
        ),
        compiler_params=pltpu.CompilerParams(
            dimension_semantics=("parallel",),   # batch splits across TCs
        ),
    )(gamma2d, x_cn, wq_f, bq2, wk_f, bk2, wv_f, bv2)

    return out_cn.reshape(B, C, W, H)


def _self_attn_ref(x, wq, bq, wk, bk, wv, bv, gamma):
    """Pure-JAX reference with the exact PyTorch Self_Attn semantics."""
    B, C, W, H = x.shape
    N = W * H
    hp = jax.lax.Precision.HIGHEST
    xf = x.reshape(B, C, N)
    q = jnp.einsum('kc,bcn->bkn', wq, xf, precision=hp) + bq[None, :, None]
    k = jnp.einsum('kc,bcn->bkn', wk, xf, precision=hp) + bk[None, :, None]
    v = jnp.einsum('kc,bcn->bkn', wv, xf, precision=hp) + bv[None, :, None]
    energy = jnp.einsum('bki,bkj->bij', q, k, precision=hp)
    attn = jax.nn.softmax(energy, axis=-1)
    out = jnp.einsum('bcj,bij->bci', v, attn, precision=hp)
    out = gamma * out + xf
    return out.reshape(B, C, W, H)


if __name__ == "__main__":
    key = jax.random.PRNGKey(0)
    ks = jax.random.split(key, 7)

    B, C, W, H = 2, 32, 16, 16          # in_dim=32 -> query/key channels = 4
    Ck = C // 8

    x = jax.random.normal(ks[0], (B, C, W, H), dtype=jnp.float32)
    wq = 0.1 * jax.random.normal(ks[1], (Ck, C), dtype=jnp.float32)
    bq = 0.1 * jax.random.normal(ks[2], (Ck,), dtype=jnp.float32)
    wk = 0.1 * jax.random.normal(ks[3], (Ck, C), dtype=jnp.float32)
    bk = 0.1 * jax.random.normal(ks[4], (Ck,), dtype=jnp.float32)
    wv = 0.1 * jax.random.normal(ks[5], (C, C), dtype=jnp.float32)
    bv = 0.1 * jax.random.normal(ks[6], (C,), dtype=jnp.float32)
    # PyTorch initializes gamma to 0 (which would reduce to out == x); use a
    # nonzero value so the attention path is actually exercised.
    gamma = jnp.float32(0.5)

    out = self_attn(x, wq, bq, wk, bk, wv, bv, gamma)
    jax.block_until_ready(out)

    ref = _self_attn_ref(x, wq, bq, wk, bk, wv, bv, gamma)
    assert out.shape == (B, C, W, H)
    max_err = float(jnp.max(jnp.abs(out - ref)))
    assert jnp.allclose(out, ref, rtol=2e-3, atol=2e-3), max_err

    print("KERNEL_OK")
</pallas_src>

<mosaic_0001>
module attributes {stable_mosaic.version = 11 : i64} {
  func.func @_self_attn_kernel(%arg0: i32, %arg1: memref<1x1xf32, #tpu.memory_space<smem>>, %arg2: memref<1x32x256xf32, #tpu.memory_space<vmem>>, %arg3: memref<4x32xf32, #tpu.memory_space<vmem>>, %arg4: memref<4x1xf32, #tpu.memory_space<vmem>>, %arg5: memref<4x32xf32, #tpu.memory_space<vmem>>, %arg6: memref<4x1xf32, #tpu.memory_space<vmem>>, %arg7: memref<32x32xf32, #tpu.memory_space<vmem>>, %arg8: memref<32x1xf32, #tpu.memory_space<vmem>>, %arg9: memref<1x32x256xf32, #tpu.memory_space<vmem>>) attributes {dimension_semantics = [#tpu.dimension_semantics<parallel>], iteration_bounds = array<i64: 2>, scalar_prefetch = 0 : i64, scratch_operands = 0 : i64, tpu.core_type = #tpu.core_type<tc>, window_params = [{transform_indices = @transform_0, window_bounds = array<i64: 1, 1>}, {transform_indices = @transform_1, window_bounds = array<i64: 1, 32, 256>}, {pipeline_mode = #tpu.pipeline_mode<synchronous>, transform_indices = @transform_2, window_bounds = array<i64: 4, 32>}, {pipeline_mode = #tpu.pipeline_mode<synchronous>, transform_indices = @transform_3, window_bounds = array<i64: 4, 1>}, {pipeline_mode = #tpu.pipeline_mode<synchronous>, transform_indices = @transform_4, window_bounds = array<i64: 4, 32>}, {pipeline_mode = #tpu.pipeline_mode<synchronous>, transform_indices = @transform_5, window_bounds = array<i64: 4, 1>}, {pipeline_mode = #tpu.pipeline_mode<synchronous>, transform_indices = @transform_6, window_bounds = array<i64: 32, 32>}, {pipeline_mode = #tpu.pipeline_mode<synchronous>, transform_indices = @transform_7, window_bounds = array<i64: 32, 1>}, {transform_indices = @transform_8, window_bounds = array<i64: 1, 32, 256>}]} {
    %c0 = arith.constant 0 : index
    %c0_0 = arith.constant 0 : index
    %c0_1 = arith.constant 0 : index
    %0 = vector.load %arg2[%c0, %c0_0, %c0_1] : memref<1x32x256xf32, #tpu.memory_space<vmem>>, vector<1x32x256xf32>
    %1 = vector.shape_cast %0 : vector<1x32x256xf32> to vector<32x256xf32>
    %c0_2 = arith.constant 0 : index
    %c0_3 = arith.constant 0 : index
    %2 = vector.load %arg3[%c0_2, %c0_3] : memref<4x32xf32, #tpu.memory_space<vmem>>, vector<4x32xf32>
    %cst = arith.constant dense<0.000000e+00> : vector<4x256xf32>
    %3 = tpu.matmul %2, %1, %cst {dimension_numbers = #tpu.dot_dimension_numbers<[1], [0], [0], [1], [0, 0, 1, 1], [], []>} : vector<4x32xf32>, vector<32x256xf32>, vector<4x256xf32> -> vector<4x256xf32>
    %c0_4 = arith.constant 0 : index
    %c0_5 = arith.constant 0 : index
    %4 = vector.load %arg4[%c0_4, %c0_5] : memref<4x1xf32, #tpu.memory_space<vmem>>, vector<4x1xf32>
    %5 = vector.broadcast %4 : vector<4x1xf32> to vector<4x256xf32>
    %6 = arith.addf %3, %5 : vector<4x256xf32>
    %c0_6 = arith.constant 0 : index
    %c0_7 = arith.constant 0 : index
    %7 = vector.load %arg5[%c0_6, %c0_7] : memref<4x32xf32, #tpu.memory_space<vmem>>, vector<4x32xf32>
    %cst_8 = arith.constant dense<0.000000e+00> : vector<4x256xf32>
    %8 = tpu.matmul %7, %1, %cst_8 {dimension_numbers = #tpu.dot_dimension_numbers<[1], [0], [0], [1], [0, 0, 1, 1], [], []>} : vector<4x32xf32>, vector<32x256xf32>, vector<4x256xf32> -> vector<4x256xf32>
    %c0_9 = arith.constant 0 : index
    %c0_10 = arith.constant 0 : index
    %9 = vector.load %arg6[%c0_9, %c0_10] : memref<4x1xf32, #tpu.memory_space<vmem>>, vector<4x1xf32>
    %10 = vector.broadcast %9 : vector<4x1xf32> to vector<4x256xf32>
    %11 = arith.addf %8, %10 : vector<4x256xf32>
    %c0_11 = arith.constant 0 : index
    %c0_12 = arith.constant 0 : index
    %12 = vector.load %arg7[%c0_11, %c0_12] : memref<32x32xf32, #tpu.memory_space<vmem>>, vector<32x32xf32>
    %cst_13 = arith.constant dense<0.000000e+00> : vector<32x256xf32>
    %13 = tpu.matmul %12, %1, %cst_13 {dimension_numbers = #tpu.dot_dimension_numbers<[1], [0], [0], [1], [0, 0, 1, 1], [], []>} : vector<32x32xf32>, vector<32x256xf32>, vector<32x256xf32> -> vector<32x256xf32>
    %c0_14 = arith.constant 0 : index
    %c0_15 = arith.constant 0 : index
    %14 = vector.load %arg8[%c0_14, %c0_15] : memref<32x1xf32, #tpu.memory_space<vmem>>, vector<32x1xf32>
    %15 = vector.broadcast %14 : vector<32x1xf32> to vector<32x256xf32>
    %16 = arith.addf %13, %15 : vector<32x256xf32>
    %cst_16 = arith.constant dense<0.000000e+00> : vector<256x256xf32>
    %17 = tpu.matmul %6, %11, %cst_16 {dimension_numbers = #tpu.dot_dimension_numbers<[0], [0], [1], [1], [0, 1, 1, 1], [], []>} : vector<4x256xf32>, vector<4x256xf32>, vector<256x256xf32> -> vector<256x256xf32>
    %cst_17 = arith.constant dense<0xFF800000> : vector<256xf32>
    %18 = vector.multi_reduction <maximumf>, %17, %cst_17 [1] : vector<256x256xf32> to vector<256xf32>
    %19 = vector.shape_cast %18 : vector<256xf32> to vector<256x1xf32>
    %20 = vector.broadcast %19 : vector<256x1xf32> to vector<256x256xf32>
    %21 = arith.subf %17, %20 : vector<256x256xf32>
    %22 = math.exp %21 : vector<256x256xf32>
    %cst_18 = arith.constant dense<0.000000e+00> : vector<256xf32>
    %23 = vector.multi_reduction <add>, %22, %cst_18 [1] : vector<256x256xf32> to vector<256xf32>
    %24 = vector.shape_cast %23 : vector<256xf32> to vector<256x1xf32>
    %25 = tpu.reciprocal %24 {approx = true} : vector<256x1xf32> -> vector<256x1xf32>
    %26 = vector.broadcast %25 : vector<256x1xf32> to vector<256x256xf32>
    %27 = arith.mulf %22, %26 : vector<256x256xf32>
    %cst_19 = arith.constant dense<0.000000e+00> : vector<32x256xf32>
    %28 = tpu.matmul %16, %27, %cst_19 {dimension_numbers = #tpu.dot_dimension_numbers<[1], [1], [0], [0], [0, 0, 1, 0], [], []>} : vector<32x256xf32>, vector<256x256xf32>, vector<32x256xf32> -> vector<32x256xf32>
    %c0_20 = arith.constant 0 : index
    %c0_21 = arith.constant 0 : index
    %29 = memref.load %arg1[%c0_20, %c0_21] : memref<1x1xf32, #tpu.memory_space<smem>>
    %30 = vector.broadcast %29 : f32 to vector<32x256xf32>
    %31 = arith.mulf %30, %28 : vector<32x256xf32>
    %32 = arith.addf %31, %1 : vector<32x256xf32>
    %c0_22 = arith.constant 0 : index
    %c0_23 = arith.constant 0 : index
    %c0_24 = arith.constant 0 : index
    %33 = vector.load %arg9[%c0_22, %c0_23, %c0_24] : memref<1x32x256xf32, #tpu.memory_space<vmem>>, vector<1x32x256xf32>
    %34 = vector.shape_cast %33 : vector<1x32x256xf32> to vector<32x256xf32>
    %35 = vector.shape_cast %32 : vector<32x256xf32> to vector<1x32x256xf32>
    tpu.vector_store %arg9[%c0_22, %c0_23, %c0_24], %35 {strides = array<i32>} : memref<1x32x256xf32, #tpu.memory_space<vmem>>, vector<1x32x256xf32>,
    return
  }
  func.func @transform_0(%arg0: i32) -> (i32, i32) {
    %c0_i32 = arith.constant 0 : i32
    %c0_i32_0 = arith.constant 0 : i32
    %c0_i32_1 = arith.constant 0 : i32
    return %c0_i32, %c0_i32_0 : i32, i32
  }
  func.func @transform_1(%arg0: i32) -> (i32, i32, i32) {
    %c0_i32 = arith.constant 0 : i32
    %c0_i32_0 = arith.constant 0 : i32
    %c0_i32_1 = arith.constant 0 : i32
    return %arg0, %c0_i32, %c0_i32_0 : i32, i32, i32
  }
  func.func @transform_2(%arg0: i32) -> (i32, i32) {
    %c0_i32 = arith.constant 0 : i32
    %c0_i32_0 = arith.constant 0 : i32
    %c0_i32_1 = arith.constant 0 : i32
    return %c0_i32, %c0_i32_0 : i32, i32
  }
  func.func @transform_3(%arg0: i32) -> (i32, i32) {
    %c0_i32 = arith.constant 0 : i32
    %c0_i32_0 = arith.constant 0 : i32
    %c0_i32_1 = arith.constant 0 : i32
    return %c0_i32, %c0_i32_0 : i32, i32
  }
  func.func @transform_4(%arg0: i32) -> (i32, i32) {
    %c0_i32 = arith.constant 0 : i32
    %c0_i32_0 = arith.constant 0 : i32
    %c0_i32_1 = arith.constant 0 : i32
    return %c0_i32, %c0_i32_0 : i32, i32
  }
  func.func @transform_5(%arg0: i32) -> (i32, i32) {
    %c0_i32 = arith.constant 0 : i32
    %c0_i32_0 = arith.constant 0 : i32
    %c0_i32_1 = arith.constant 0 : i32
    return %c0_i32, %c0_i32_0 : i32, i32
  }
  func.func @transform_6(%arg0: i32) -> (i32, i32) {
    %c0_i32 = arith.constant 0 : i32
    %c0_i32_0 = arith.constant 0 : i32
    %c0_i32_1 = arith.constant 0 : i32
    return %c0_i32, %c0_i32_0 : i32, i32
  }
  func.func @transform_7(%arg0: i32) -> (i32, i32) {
    %c0_i32 = arith.constant 0 : i32
    %c0_i32_0 = arith.constant 0 : i32
    %c0_i32_1 = arith.constant 0 : i32
    return %c0_i32, %c0_i32_0 : i32, i32
  }
  func.func @transform_8(%arg0: i32) -> (i32, i32, i32) {
    %c0_i32 = arith.constant 0 : i32
    %c0_i32_0 = arith.constant 0 : i32
    %c0_i32_1 = arith.constant 0 : i32
    return %arg0, %c0_i32, %c0_i32_0 : i32, i32, i32
  }
}

</mosaic_0001>

<llo_original>
// kernel: tpu_custom_call.1
$region0: #{tpu_custom_call.1}
  #allocation0 [shape = 'u32[]', space=smem, size = 0x4, offset = 0x4, fixed_abs, tag = 'smem constant byte address 0x4 - core index']
  #allocation1 [shape = 'u32[144,128]{1,0:T(1,128)}', space=vmem, size = 0x12000, scoped, tag = 'internal scratch']
  #allocation2 [shape = 'f32[1,1]{1,0:T(1,128)S(6)}', space=smem, size = 0x200, scoped, tag = 'scoped memory for tpu_custom_call.1']
  %s0 = inlined_call_operand.<no memory space> [shape: f32[1,1], index: 0, kind: input, shape index: {}]
  %s1 = inlined_call_operand.hbm [shape: f32[2,32,256], index: 1, kind: input, shape index: {}]
  %s2 = inlined_call_operand.vmem [shape: f32[4,32], index: 2, kind: input, shape index: {}]
  %s3 = inlined_call_operand.vmem [shape: f32[4,1], index: 3, kind: input, shape index: {}]
  %s4 = inlined_call_operand.vmem [shape: f32[4,32], index: 4, kind: input, shape index: {}]
  %s5 = inlined_call_operand.vmem [shape: f32[4,1], index: 5, kind: input, shape index: {}]
  %s6 = inlined_call_operand.vmem [shape: f32[32,32], index: 6, kind: input, shape index: {}]
  %s7 = inlined_call_operand.vmem [shape: f32[32,1], index: 7, kind: input, shape index: {}]
  %s8 = inlined_call_operand.hbm [shape: f32[2,32,256], index: 8, kind: output, shape index: {}]
  %s9 = sld [smem:[#allocation0]]
  $region69: #{tpu_custom_call.1} parent=0
    _
  %s11 = ssub.s32 1, %s9
  %s12 = scalar_select 0, %s11, %s9
  %13 = sst [smem:[#allocation2]] %s0
  $region1: #{tpu_custom_call.1} parent=0
    #allocation3 [shape = 'u8[65536]{0}', space=vmem, size = 0x10000, scoped, tag = 'input window, operand 1']
    #allocation4 [shape = 's32[2]{0}', space=sflag, size = 0x8, scoped, tag = 'scoped memory for tpu_custom_call.1']
    #allocation5 [shape = 's32[2]{0}', space=sflag, size = 0x8, scoped, tag = 'scoped memory for tpu_custom_call.1']
    #allocation6 [shape = 'u8[65536]{0}', space=vmem, size = 0x10000, scoped, tag = 'output window, operand 0']
    %14 = vsyncpa [#allocation4], 0
    %s15 = scalar_lea.sflag [#allocation4], 1
    %16 = vsyncpa %s15, 0
    %17 = vsyncpa [#allocation5], 0
    %s18 = scalar_lea.sflag [#allocation5], 1
    %19 = vsyncpa %s18, 0
    loop: start=0, step=1, limit=4
    $region2: #{tpu_custom_call.1} parent=1 // loop_pre_header
      _
    $region3: #{tpu_custom_call.1} parent=1 // loop_header
      %s21 = sphi 0, %s25
      %p22 = scmp.ge.s32.totalorder %s21, 4
      %s29 = sphi 0, %s29
      %s31 = sphi 0, %s29
      %s32 = sphi 0, %s31
      %s46 = sphi 0, %s32
      %s52 = sphi 0, %s54
      %s55 = sphi 0, %s52
      %s56 = sphi 0, %s55
      %s72 = sphi 0, %s56
      %s76 = sphi 0, %s76
      %s78 = sphi 0, %s76
      %s79 = sphi 0, %s78
      %s93 = sphi 0, %s79
      %s97 = sphi 0, %s97
      %s99 = sphi 0, %s97
      %s100 = sphi 0, %s99
      %s114 = sphi 0, %s100
      %s118 = sphi 0, %s118
      %s120 = sphi 0, %s118
      %s121 = sphi 0, %s120
      %s135 = sphi 0, %s121
      %s139 = sphi 0, %s139
      %s141 = sphi 0, %s139
      %s142 = sphi 0, %s141
      %s156 = sphi 0, %s142
      %s160 = sphi 0, %s160
      %s162 = sphi 0, %s160
      %s163 = sphi 0, %s162
      %s177 = sphi 0, %s163
      %s181 = sphi 0, %s181
      %s183 = sphi 0, %s181
      %s184 = sphi 0, %s183
      %s198 = sphi 0, %s184
      %s204 = sphi 0, %s206
      %s207 = sphi 0, %s204
      %s208 = sphi 0, %s207
      %s224 = sphi 0, %s208
    $region4: #{tpu_custom_call.1} parent=1 // loop_header_branch
      %24 = sbr.rel (%p22) target = $region8
    $region5: #{tpu_custom_call.1} parent=1 // loop_body
      %s26 = ssub.s32 %s21, 1
      %s27 = ssub.s32 %s21, 2
      %s28 = sadd.s32 %s21, 1
      %s30 = sadd.s32 %s29, 1
      %p33 = scmp.eq.s32.totalorder %s21, 1
      %p34 = scmp.ne.s32.totalorder %s29, %s31
      %p35 = scmp.eq.s32.totalorder %s21, 0
      %p36 = por %p34, %p35
      %p37 = scmp.ne.s32.totalorder %s29, %s31
      %p38 = scmp.eq.s32.totalorder %s26, 1
      %p39 = por %p37, %p38
      %p40 = scmp.ne.s32.totalorder %s31, %s32
      %p41 = scmp.eq.s32.totalorder %s26, 0
      %p42 = por %p40, %p41
      %p43 = scmp.ne.s32.totalorder %s31, %s32
      %p44 = scmp.eq.s32.totalorder %s27, 1
      %p45 = por %p43, %p44
      %p47 = scmp.ne.s32.totalorder %s32, %s46
      %p48 = scmp.eq.s32.totalorder %s27, 0
      %p49 = por %p47, %p48
      %s50 = ssub.s32 %s21, %s28
      %p51 = scmp.eq.s32.totalorder %s50, 0
      %s53 = sadd.s32 %s52, 1
      %s54 = scalar_select %p51, %s52, %s53
      %p57 = pneg %p51
      %p58 = scmp.eq.s32.totalorder %s21, 1
      %p59 = por %p57, %p58
      %p60 = scmp.ne.s32.totalorder %s52, %s55
      %p61 = scmp.eq.s32.totalorder %s21, 0
      %p62 = por %p60, %p61
      %p63 = scmp.ne.s32.totalorder %s52, %s55
      %p64 = scmp.eq.s32.totalorder %s26, 1
      %p65 = por %p63, %p64
      %p66 = scmp.ne.s32.totalorder %s55, %s56
      %p67 = scmp.eq.s32.totalorder %s26, 0
      %p68 = por %p66, %p67
      %p69 = scmp.ne.s32.totalorder %s55, %s56
      %p70 = scmp.eq.s32.totalorder %s27, 1
      %p71 = por %p69, %p70
      %p73 = scmp.ne.s32.totalorder %s56, %s72
      %p74 = scmp.eq.s32.totalorder %s27, 0
      %p75 = por %p73, %p74
      %s77 = sadd.s32 %s76, 1
      %p80 = scmp.eq.s32.totalorder %s21, 1
      %p81 = scmp.ne.s32.totalorder %s76, %s78
      %p82 = scmp.eq.s32.totalorder %s21, 0
      %p83 = por %p81, %p82
      %p84 = scmp.ne.s32.totalorder %s76, %s78
      %p85 = scmp.eq.s32.totalorder %s26, 1
      %p86 = por %p84, %p85
      %p87 = scmp.ne.s32.totalorder %s78, %s79
      %p88 = scmp.eq.s32.totalorder %s26, 0
      %p89 = por %p87, %p88
      %p90 = scmp.ne.s32.totalorder %s78, %s79
      %p91 = scmp.eq.s32.totalorder %s27, 1
      %p92 = por %p90, %p91
      %p94 = scmp.ne.s32.totalorder %s79, %s93
      %p95 = scmp.eq.s32.totalorder %s27, 0
      %p96 = por %p94, %p95
      %s98 = sadd.s32 %s97, 1
      %p101 = scmp.eq.s32.totalorder %s21, 1
      %p102 = scmp.ne.s32.totalorder %s97, %s99
      %p103 = scmp.eq.s32.totalorder %s21, 0
      %p104 = por %p102, %p103
      %p105 = scmp.ne.s32.totalorder %s97, %s99
      %p106 = scmp.eq.s32.totalorder %s26, 1
      %p107 = por %p105, %p106
      %p108 = scmp.ne.s32.totalorder %s99, %s100
      %p109 = scmp.eq.s32.totalorder %s26, 0
      %p110 = por %p108, %p109
      %p111 = scmp.ne.s32.totalorder %s99, %s100
      %p112 = scmp.eq.s32.totalorder %s27, 1
      %p113 = por %p111, %p112
      %p115 = scmp.ne.s32.totalorder %s100, %s114
      %p116 = scmp.eq.s32.totalorder %s27, 0
      %p117 = por %p115, %p116
      %s119 = sadd.s32 %s118, 1
      %p122 = scmp.eq.s32.totalorder %s21, 1
      %p123 = scmp.ne.s32.totalorder %s118, %s120
      %p124 = scmp.eq.s32.totalorder %s21, 0
      %p125 = por %p123, %p124
      %p126 = scmp.ne.s32.totalorder %s118, %s120
      %p127 = scmp.eq.s32.totalorder %s26, 1
      %p128 = por %p126, %p127
      %p129 = scmp.ne.s32.totalorder %s120, %s121
      %p130 = scmp.eq.s32.totalorder %s26, 0
      %p131 = por %p129, %p130
      %p132 = scmp.ne.s32.totalorder %s120, %s121
      %p133 = scmp.eq.s32.totalorder %s27, 1
      %p134 = por %p132, %p133
      %p136 = scmp.ne.s32.totalorder %s121, %s135
      %p137 = scmp.eq.s32.totalorder %s27, 0
      %p138 = por %p136, %p137
      %s140 = sadd.s32 %s139, 1
      %p143 = scmp.eq.s32.totalorder %s21, 1
      %p144 = scmp.ne.s32.totalorder %s139, %s141
      %p145 = scmp.eq.s32.totalorder %s21, 0
      %p146 = por %p144, %p145
      %p147 = scmp.ne.s32.totalorder %s139, %s141
      %p148 = scmp.eq.s32.totalorder %s26, 1
      %p149 = por %p147, %p148
      %p150 = scmp.ne.s32.totalorder %s141, %s142
      %p151 = scmp.eq.s32.totalorder %s26, 0
      %p152 = por %p150, %p151
      %p153 = scmp.ne.s32.totalorder %s141, %s142
      %p154 = scmp.eq.s32.totalorder %s27, 1
      %p155 = por %p153, %p154
      %p157 = scmp.ne.s32.totalorder %s142, %s156
      %p158 = scmp.eq.s32.totalorder %s27, 0
      %p159 = por %p157, %p158
      %s161 = sadd.s32 %s160, 1
      %p164 = scmp.eq.s32.totalorder %s21, 1
      %p165 = scmp.ne.s32.totalorder %s160, %s162
      %p166 = scmp.eq.s32.totalorder %s21, 0
      %p167 = por %p165, %p166
      %p168 = scmp.ne.s32.totalorder %s160, %s162
      %p169 = scmp.eq.s32.totalorder %s26, 1
      %p170 = por %p168, %p169
      %p171 = scmp.ne.s32.totalorder %s162, %s163
      %p172 = scmp.eq.s32.totalorder %s26, 0
      %p173 = por %p171, %p172
      %p174 = scmp.ne.s32.totalorder %s162, %s163
      %p175 = scmp.eq.s32.totalorder %s27, 1
      %p176 = por %p174, %p175
      %p178 = scmp.ne.s32.totalorder %s163, %s177
      %p179 = scmp.eq.s32.totalorder %s27, 0
      %p180 = por %p178, %p179
      %s182 = sadd.s32 %s181, 1
      %p185 = scmp.eq.s32.totalorder %s21, 1
      %p186 = scmp.ne.s32.totalorder %s181, %s183
      %p187 = scmp.eq.s32.totalorder %s21, 0
      %p188 = por %p186, %p187
      %p189 = scmp.ne.s32.totalorder %s181, %s183
      %p190 = scmp.eq.s32.totalorder %s26, 1
      %p191 = por %p189, %p190
      %p192 = scmp.ne.s32.totalorder %s183, %s184
      %p193 = scmp.eq.s32.totalorder %s26, 0
      %p194 = por %p192, %p193
      %p195 = scmp.ne.s32.totalorder %s183, %s184
      %p196 = scmp.eq.s32.totalorder %s27, 1
      %p197 = por %p195, %p196
      %p199 = scmp.ne.s32.totalorder %s184, %s198
      %p200 = scmp.eq.s32.totalorder %s27, 0
      %p201 = por %p199, %p200
      %s202 = ssub.s32 %s21, %s28
      %p203 = scmp.eq.s32.totalorder %s202, 0
      %s205 = sadd.s32 %s204, 1
      %s206 = scalar_select %p203, %s204, %s205
      %p209 = pneg %p203
      %p210 = scmp.eq.s32.totalorder %s21, 1
      %p211 = por %p209, %p210
      %p212 = scmp.ne.s32.totalorder %s204, %s207
      %p213 = scmp.eq.s32.totalorder %s21, 0
      %p214 = por %p212, %p213
      %p215 = scmp.ne.s32.totalorder %s204, %s207
      %p216 = scmp.eq.s32.totalorder %s26, 1
      %p217 = por %p215, %p216
      %p218 = scmp.ne.s32.totalorder %s207, %s208
      %p219 = scmp.eq.s32.totalorder %s26, 0
      %p220 = por %p218, %p219
      %p221 = scmp.ne.s32.totalorder %s207, %s208
      %p222 = scmp.eq.s32.totalorder %s27, 1
      %p223 = por %p221, %p222
      %p225 = scmp.ne.s32.totalorder %s208, %s224
      %p226 = scmp.eq.s32.totalorder %s27, 0
      %p227 = por %p225, %p226
      %p228 = scmp.le.s32.totalorder 1, %s21
      %p229 = scmp.lt.s32.totalorder %s21, 3
      %p230 = pnand %p228, %p229
      %p231 = pneg %p230
      // Predicated region
      $region9: #{tpu_custom_call.1} parent=5 // pred_check
        _
      $region10: #{tpu_custom_call.1} parent=5 // pred_check_branch
        %233 = sbr.rel (%p230) target = $region12
      $region11: #{tpu_custom_call.1} parent=5 // pred_region
        %s234 = ssub.s32 %s21, 1
        // Predicated region
        $region13: #{tpu_custom_call.1} parent=11 // pred_check
          %p235 = pneg %p42
        $region14: #{tpu_custom_call.1} parent=11 // pred_check_branch
          %237 = sbr.rel (%p235) target = $region16
        $region15: #{tpu_custom_call.1} parent=11 // pred_region
          _
        $region16: #{tpu_custom_call.1} parent=11 // pred_fallthru
          _
        // Predicated region
        $region17: #{tpu_custom_call.1} parent=11 // pred_check
          %p238 = pneg %p89
        $region18: #{tpu_custom_call.1} parent=11 // pred_check_branch
          %240 = sbr.rel (%p238) target = $region20
        $region19: #{tpu_custom_call.1} parent=11 // pred_region
          _
        $region20: #{tpu_custom_call.1} parent=11 // pred_fallthru
          _
        // Predicated region
        $region21: #{tpu_custom_call.1} parent=11 // pred_check
          %p241 = pneg %p110
        $region22: #{tpu_custom_call.1} parent=11 // pred_check_branch
          %243 = sbr.rel (%p241) target = $region24
        $region23: #{tpu_custom_call.1} parent=11 // pred_region
          _
        $region24: #{tpu_custom_call.1} parent=11 // pred_fallthru
          _
        // Predicated region
        $region25: #{tpu_custom_call.1} parent=11 // pred_check
          %p244 = pneg %p131
        $region26: #{tpu_custom_call.1} parent=11 // pred_check_branch
          %246 = sbr.rel (%p244) target = $region28
        $region27: #{tpu_custom_call.1} parent=11 // pred_region
          _
        $region28: #{tpu_custom_call.1} parent=11 // pred_fallthru
          _
        // Predicated region
        $region29: #{tpu_custom_call.1} parent=11 // pred_check
          %p247 = pneg %p152
        $region30: #{tpu_custom_call.1} parent=11 // pred_check_branch
          %249 = sbr.rel (%p247) target = $region32
        $region31: #{tpu_custom_call.1} parent=11 // pred_region
          _
        $region32: #{tpu_custom_call.1} parent=11 // pred_fallthru
          _
        // Predicated region
        $region33: #{tpu_custom_call.1} parent=11 // pred_check
          %p250 = pneg %p173
        $region34: #{tpu_custom_call.1} parent=11 // pred_check_branch
          %252 = sbr.rel (%p250) target = $region36
        $region35: #{tpu_custom_call.1} parent=11 // pred_region
          _
        $region36: #{tpu_custom_call.1} parent=11 // pred_fallthru
          _
        // Predicated region
        $region37: #{tpu_custom_call.1} parent=11 // pred_check
          %p253 = pneg %p194
        $region38: #{tpu_custom_call.1} parent=11 // pred_check_branch
          %255 = sbr.rel (%p253) target = $region40
        $region39: #{tpu_custom_call.1} parent=11 // pred_region
          _
        $region40: #{tpu_custom_call.1} parent=11 // pred_fallthru
          _
      $region12: #{tpu_custom_call.1} parent=5 // pred_fallthru
        _
      %p256 = scmp.lt.s32.totalorder %s21, 2
      // Predicated region
      $region41: #{tpu_custom_call.1} parent=5 // pred_check
        %p257 = pneg %p256
      $region42: #{tpu_custom_call.1} parent=5 // pred_check_branch
        %259 = sbr.rel (%p257) target = $region44
      $region43: #{tpu_custom_call.1} parent=5 // pred_region
        // Predicated region
        $region45: #{tpu_custom_call.1} parent=43 // pred_check
          %p260 = pneg %p62
        $region46: #{tpu_custom_call.1} parent=43 // pred_check_branch
          %262 = sbr.rel (%p260) target = $region48
        $region47: #{tpu_custom_call.1} parent=43 // pred_region
          %s263 = sand.u32 %s52, 1
          %s264 = scalar_lea.sflag [#allocation4], %s263
          %s265 = sand.u32 %s52, 1
          %s266 = smul.addr %s265, 64
          %s267 = scalar_lea.vmem [#allocation3], %s266
          %s269 = ssub.s32 1024, 1024
          %270 = vsyncadd %s264, %s269
          %s271 = smul.addr %s21, 8
          %s272 = smul.addr %s271, 128
          %s273 = scalar_lea.hbm %s1, %s272
          %s274 = sshll.u32 %s267, 4
          %s275 = int_to_ptr.vmem [resolvable:$true] %s274
          %280 = dma.hbm_to_vmem [thread:$0]  %s273, 1024, %s275, %s264, 256, 256, 16
        $region48: #{tpu_custom_call.1} parent=43 // pred_fallthru
          _
      $region44: #{tpu_custom_call.1} parent=5 // pred_fallthru
        _
      %p281 = scmp.le.s32.totalorder 1, %s21
      %p282 = scmp.lt.s32.totalorder %s21, 3
      %p283 = pnand %p281, %p282
      %p284 = pneg %p283
      // Predicated region
      $region49: #{tpu_custom_call.1} parent=5 // pred_check
        _
      $region50: #{tpu_custom_call.1} parent=5 // pred_check_branch
        %286 = sbr.rel (%p283) target = $region52
      $region51: #{tpu_custom_call.1} parent=5 // pred_region
        %s287 = ssub.s32 %s21, 1
        %s288 = sand.u32 %s55, 1
        %s289 = scalar_lea.sflag [#allocation4], %s288
        %s290 = sand.u32 %s55, 1
        %s291 = smul.addr %s290, 64
        %s292 = scalar_lea.vmem [#allocation3], %s291
        // Predicated region
        $region53: #{tpu_custom_call.1} parent=51 // pred_check
          %p293 = pneg %p68
        $region54: #{tpu_custom_call.1} parent=51 // pred_check_branch
          %295 = sbr.rel (%p293) target = $region56
        $region55: #{tpu_custom_call.1} parent=51 // pred_region
          %296 = dma.done %s289, 1024
        $region56: #{tpu_custom_call.1} parent=51 // pred_fallthru
          _
        %p297 = pneg %p42
        %p298 = pneg %p39
        %s299 = sand.u32 %s55, 1
        %s300 = scalar_lea.sflag [#allocation4], %s299
        %s301 = sand.u32 %s55, 1
        %s302 = smul.addr %s301, 64
        %s303 = scalar_lea.vmem [#allocation3], %s302
        %p304 = pneg %p68
        %p305 = pneg %p65
        %p306 = pneg %p89
        %p307 = pneg %p86
        %p308 = pneg %p110
        %p309 = pneg %p107
        %p310 = pneg %p131
        %p311 = pneg %p128
        %p312 = pneg %p152
        %p313 = pneg %p149
        %p314 = pneg %p173
        %p315 = pneg %p170
        %p316 = pneg %p194
        %p317 = pneg %p191
        %p318 = pneg %p220
        %p319 = pneg %p217
        %s320 = sand.u32 %s207, 1
        %s321 = scalar_lea.sflag [#allocation5], %s320
        %s322 = sand.u32 %s207, 1
        %s323 = smul.addr %s322, 64
        %s324 = scalar_lea.vmem [#allocation6], %s323
        %v325 = vld [vmem:[%s292] sm:$0xff]
        %v326 = vld [vmem:[%s292 + $0x8] sm:$0xff]
        %v327 = vld [vmem:[%s292 + $0x10] sm:$0xff]
        %v328 = vld [vmem:[%s292 + $0x18] sm:$0xff]
        %v329 = vld [vmem:[%s292 + $0x20] sm:$0xff]
        %v330 = vld [vmem:[%s292 + $0x28] sm:$0xff]
        %v331 = vld [vmem:[%s292 + $0x30] sm:$0xff]
        %v332 = vld [vmem:[%s292 + $0x38] sm:$0xff]
        %v333 = vld [vmem:[%s2] sm:$0xf]
        %v334 = vld [vmem:[%s3] sm:$0xf]
        %336 = vset.pattern.permute.xlu0 0
        %337 = vperm.xlu0 %336, %v334
        %v338 = vpop.permute.xlu0 %337
        %vm340 = vcmask 261120
        %v342 = vsel %vm340, %v333, 0
        %344 = vmatprep.subr.mxu0 %v326
        %345 = vmatpush1.msra.mxu0 %v325
        %346 = vmatprep.subr.mxu0 %v328
        %347 = vmatpush1.msra.mxu0 %v327
        %348 = vmatprep.subr.mxu0 %v330
        %349 = vmatpush1.msra.mxu0 %v329
        %350 = vmatprep.subr.mxu0 %v332
        %351 = vmatpush1.msra.mxu0 %v331
        %352 = vmatprep.subr.mxu0 0.0
        %353 = vmatpush1.msra.mxu0 0.0
        %354 = vmatprep.subr.mxu0 0.0
        %355 = vmatpush1.msra.mxu0 0.0
        %356 = vmatprep.subr.mxu0 0.0
        %357 = vmatpush1.msra.mxu0 0.0
        %358 = vmatprep.subr.mxu0 0.0
        %359 = vmatpush1.msra.mxu0 0.0
        %360 = vmatprep.subr.mxu0 0.0
        %361 = vmatpush1.msra.mxu0 0.0
        %362 = vmatprep.subr.mxu0 0.0
        %363 = vmatpush1.msra.mxu0 0.0
        %364 = vmatprep.subr.mxu0 0.0
        %365 = vmatpush1.msra.mxu0 0.0
        %366 = vmatprep.subr.mxu0 0.0
        %367 = vmatpush1.msra.mxu0 0.0
        %368 = vmatprep.subr.mxu0 0.0
        %369 = vmatpush1.msra.mxu0 0.0
        %370 = vmatprep.subr.mxu0 0.0
        %371 = vmatpush1.msra.mxu0 0.0
        %372 = vmatprep.subr.mxu0 0.0
        %373 = vmatpush1.msra.mxu0 0.0
        %374 = vmatprep.subr.mxu0 0.0
        %375 = vmatpush1.msra.mxu0 0.0
        %376 = vmatprep.subr.mxu0 0.0
        %377 = vmatpush1.msra.mxu0 0.0
        %378 = vmatprep.subr.mxu0 0.0
        %379 = vmatpush1.msra.mxu0 0.0
        %380 = vmatprep.subr.mxu0 0.0
        %381 = vmatpush1.msra.mxu0 0.0
        %382 = vmatprep.subr.mxu0 0.0
        %383 = vmatpush1.msra.mxu0 0.0
        %384 = vmatprep.subr.mxu0 0.0
        %385 = vmatpush1.msra.mxu0 0.0
        %386 = vmatprep.subr.mxu0 0.0
        %387 = vmatpush1.msra.mxu0 0.0
        %388 = vmatprep.subr.mxu0 0.0
        %389 = vmatpush1.msra.mxu0 0.0
        %390 = vmatprep.subr.mxu0 0.0
        %391 = vmatpush1.msra.mxu0 0.0
        %392 = vmatprep.subr.mxu0 0.0
        %393 = vmatpush1.msra.mxu0 0.0
        %394 = vmatprep.subr.mxu0 0.0
        %395 = vmatpush1.msra.mxu0 0.0
        %396 = vmatprep.subr.mxu0 0.0
        %397 = vmatpush1.msra.mxu0 0.0
        %398 = vmatprep.subr.mxu0 0.0
        %399 = vmatpush1.msra.mxu0 0.0
        %400 = vmatprep.subr.mxu0 0.0
        %401 = vmatpush1.msra.mxu0 0.0
        %402 = vmatprep.subr.mxu0 0.0
        %403 = vmatpush1.msra.mxu0 0.0
        %404 = vmatprep.subr.mxu0 0.0
        %405 = vmatpush1.msra.mxu0 0.0
        %406 = vmatprep.subr.mxu0 0.0
        %407 = vmatpush1.msra.mxu0 0.0
        %408 = vmatprep.mubr.f32.mxu0 0.0
        %409 = vmatmul.mubr.f32.gmra.mrb[0].mxu0 %v342
        %v410 = vpop.f32.mrb[0].mxu0
        %v411 = vadd.f32 %v338, %v410
        %v412 = vpop.f32.mrb[0].mxu0
        %v413 = vadd.f32 %v338, %v412
        %414 = vdwg.mxu0
        %v415 = vld [vmem:[%s4] sm:$0xf]
        %v416 = vld [vmem:[%s5] sm:$0xf]
        %418 = vset.pattern.permute.xlu0 0
        %419 = vperm.xlu0 %418, %v416
        %v420 = vpop.permute.xlu0 %419
        %v423 = vsel %vm340, %v415, 0
        %425 = vmatprep.subr.mxu0 %v326
        %426 = vmatpush1.msra.mxu0 %v325
        %427 = vmatprep.subr.mxu0 %v328
        %428 = vmatpush1.msra.mxu0 %v327
        %429 = vmatprep.subr.mxu0 %v330
        %430 = vmatpush1.msra.mxu0 %v329
        %431 = vmatprep.subr.mxu0 %v332
        %432 = vmatpush1.msra.mxu0 %v331
        %433 = vmatprep.subr.mxu0 0.0
        %434 = vmatpush1.msra.mxu0 0.0
        %435 = vmatprep.subr.mxu0 0.0
        %436 = vmatpush1.msra.mxu0 0.0
        %437 = vmatprep.subr.mxu0 0.0
        %438 = vmatpush1.msra.mxu0 0.0
        %439 = vmatprep.subr.mxu0 0.0
        %440 = vmatpush1.msra.mxu0 0.0
        %441 = vmatprep.subr.mxu0 0.0
        %442 = vmatpush1.msra.mxu0 0.0
        %443 = vmatprep.subr.mxu0 0.0
        %444 = vmatpush1.msra.mxu0 0.0
        %445 = vmatprep.subr.mxu0 0.0
        %446 = vmatpush1.msra.mxu0 0.0
        %447 = vmatprep.subr.mxu0 0.0
        %448 = vmatpush1.msra.mxu0 0.0
        %449 = vmatprep.subr.mxu0 0.0
        %450 = vmatpush1.msra.mxu0 0.0
        %451 = vmatprep.subr.mxu0 0.0
        %452 = vmatpush1.msra.mxu0 0.0
        %453 = vmatprep.subr.mxu0 0.0
        %454 = vmatpush1.msra.mxu0 0.0
        %455 = vmatprep.subr.mxu0 0.0
        %456 = vmatpush1.msra.mxu0 0.0
        %457 = vmatprep.subr.mxu0 0.0
        %458 = vmatpush1.msra.mxu0 0.0
        %459 = vmatprep.subr.mxu0 0.0
        %460 = vmatpush1.msra.mxu0 0.0
        %461 = vmatprep.subr.mxu0 0.0
        %462 = vmatpush1.msra.mxu0 0.0
        %463 = vmatprep.subr.mxu0 0.0
        %464 = vmatpush1.msra.mxu0 0.0
        %465 = vmatprep.subr.mxu0 0.0
        %466 = vmatpush1.msra.mxu0 0.0
        %467 = vmatprep.subr.mxu0 0.0
        %468 = vmatpush1.msra.mxu0 0.0
        %469 = vmatprep.subr.mxu0 0.0
        %470 = vmatpush1.msra.mxu0 0.0
        %471 = vmatprep.subr.mxu0 0.0
        %472 = vmatpush1.msra.mxu0 0.0
        %473 = vmatprep.subr.mxu0 0.0
        %474 = vmatpush1.msra.mxu0 0.0
        %475 = vmatprep.subr.mxu0 0.0
        %476 = vmatpush1.msra.mxu0 0.0
        %477 = vmatprep.subr.mxu0 0.0
        %478 = vmatpush1.msra.mxu0 0.0
        %479 = vmatprep.subr.mxu0 0.0
        %480 = vmatpush1.msra.mxu0 0.0
        %481 = vmatprep.subr.mxu0 0.0
        %482 = vmatpush1.msra.mxu0 0.0
        %483 = vmatprep.subr.mxu0 0.0
        %484 = vmatpush1.msra.mxu0 0.0
        %485 = vmatprep.subr.mxu0 0.0
        %486 = vmatpush1.msra.mxu0 0.0
        %487 = vmatprep.subr.mxu0 0.0
        %488 = vmatpush1.msra.mxu0 0.0
        %489 = vmatprep.mubr.f32.mxu0 0.0
        %490 = vmatmul.mubr.f32.gmra.mrb[0].mxu0 %v423
        %v491 = vpop.f32.mrb[0].mxu0
        %v492 = vadd.f32 %v420, %v491
        %v493 = vpop.f32.mrb[0].mxu0
        %v494 = vadd.f32 %v420, %v493
        %495 = vdwg.mxu0
        %v496 = vld [vmem:[%s6] sm:$0xff]
        %v497 = vld [vmem:[%s6 + $0x8] sm:$0xff]
        %v498 = vld [vmem:[%s6 + $0x10] sm:$0xff]
        %v499 = vld [vmem:[%s6 + $0x18] sm:$0xff]
        %v500 = vld [vmem:[%s7] sm:$0xff]
        %v501 = vld [vmem:[%s7 + $0x8] sm:$0xff]
        %v502 = vld [vmem:[%s7 + $0x10] sm:$0xff]
        %v503 = vld [vmem:[%s7 + $0x18] sm:$0xff]
        %505 = vset.pattern.permute.xlu0 0
        %506 = vperm.xlu0 %505, %v500
        %v507 = vpop.permute.xlu0 %506
        %510 = vset.pattern.permute.xlu0 0
        %511 = vperm.xlu0 %510, %v501
        %v512 = vpop.permute.xlu0 %511
        %515 = vset.pattern.permute.xlu0 0
        %516 = vperm.xlu0 %515, %v502
        %v517 = vpop.permute.xlu0 %516
        %520 = vset.pattern.permute.xlu0 0
        %521 = vperm.xlu0 %520, %v503
        %v522 = vpop.permute.xlu0 %521
        %v525 = vsel %vm340, %v496, 0
        %v528 = vsel %vm340, %v497, 0
        %v531 = vsel %vm340, %v498, 0
        %v534 = vsel %vm340, %v499, 0
        %536 = vmatprep.subr.mxu0 %v326
        %537 = vmatpush1.msra.mxu0 %v325
        %538 = vmatprep.subr.mxu0 %v328
        %539 = vmatpush1.msra.mxu0 %v327
        %540 = vmatprep.subr.mxu0 %v330
        %541 = vmatpush1.msra.mxu0 %v329
        %542 = vmatprep.subr.mxu0 %v332
        %543 = vmatpush1.msra.mxu0 %v331
        %544 = vmatprep.subr.mxu0 0.0
        %545 = vmatpush1.msra.mxu0 0.0
        %546 = vmatprep.subr.mxu0 0.0
        %547 = vmatpush1.msra.mxu0 0.0
        %548 = vmatprep.subr.mxu0 0.0
        %549 = vmatpush1.msra.mxu0 0.0
        %550 = vmatprep.subr.mxu0 0.0
        %551 = vmatpush1.msra.mxu0 0.0
        %552 = vmatprep.subr.mxu0 0.0
        %553 = vmatpush1.msra.mxu0 0.0
        %554 = vmatprep.subr.mxu0 0.0
        %555 = vmatpush1.msra.mxu0 0.0
        %556 = vmatprep.subr.mxu0 0.0
        %557 = vmatpush1.msra.mxu0 0.0
        %558 = vmatprep.subr.mxu0 0.0
        %559 = vmatpush1.msra.mxu0 0.0
        %560 = vmatprep.subr.mxu0 0.0
        %561 = vmatpush1.msra.mxu0 0.0
        %562 = vmatprep.subr.mxu0 0.0
        %563 = vmatpush1.msra.mxu0 0.0
        %564 = vmatprep.subr.mxu0 0.0
        %565 = vmatpush1.msra.mxu0 0.0
        %566 = vmatprep.subr.mxu0 0.0
        %567 = vmatpush1.msra.mxu0 0.0
        %568 = vmatprep.subr.mxu0 0.0
        %569 = vmatpush1.msra.mxu0 0.0
        %570 = vmatprep.subr.mxu0 0.0
        %571 = vmatpush1.msra.mxu0 0.0
        %572 = vmatprep.subr.mxu0 0.0
        %573 = vmatpush1.msra.mxu0 0.0
        %574 = vmatprep.subr.mxu0 0.0
        %575 = vmatpush1.msra.mxu0 0.0
        %576 = vmatprep.subr.mxu0 0.0
        %577 = vmatpush1.msra.mxu0 0.0
        %578 = vmatprep.subr.mxu0 0.0
        %579 = vmatpush1.msra.mxu0 0.0
        %580 = vmatprep.subr.mxu0 0.0
        %581 = vmatpush1.msra.mxu0 0.0
        %582 = vmatprep.subr.mxu0 0.0
        %583 = vmatpush1.msra.mxu0 0.0
        %584 = vmatprep.subr.mxu0 0.0
        %585 = vmatpush1.msra.mxu0 0.0
        %586 = vmatprep.subr.mxu0 0.0
        %587 = vmatpush1.msra.mxu0 0.0
        %588 = vmatprep.subr.mxu0 0.0
        %589 = vmatpush1.msra.mxu0 0.0
        %590 = vmatprep.subr.mxu0 0.0
        %591 = vmatpush1.msra.mxu0 0.0
        %592 = vmatprep.subr.mxu0 0.0
        %593 = vmatpush1.msra.mxu0 0.0
        %594 = vmatprep.subr.mxu0 0.0
        %595 = vmatpush1.msra.mxu0 0.0
        %596 = vmatprep.subr.mxu0 0.0
        %597 = vmatpush1.msra.mxu0 0.0
        %598 = vmatprep.subr.mxu0 0.0
        %599 = vmatpush1.msra.mxu0 0.0
        %600 = vmatprep.mubr.f32.mxu0 0.0
        %601 = vmatmul.mubr.f32.gmra.mrb[0].mxu0 %v525
        %v602 = vpop.f32.mrb[0].mxu0
        %v603 = vadd.f32 %v507, %v602
        %v604 = vpop.f32.mrb[0].mxu0
        %v605 = vadd.f32 %v507, %v604
        %606 = vmatprep.mubr.f32.mxu0 0.0
        %607 = vmatmul.mubr.f32.gmra.mrb[0].mxu0 %v528
        %v608 = vpop.f32.mrb[0].mxu0
        %v609 = vadd.f32 %v512, %v608
        %v610 = vpop.f32.mrb[0].mxu0
        %v611 = vadd.f32 %v512, %v610
        %612 = vmatprep.mubr.f32.mxu0 0.0
        %613 = vmatmul.mubr.f32.gmra.mrb[0].mxu0 %v531
        %v614 = vpop.f32.mrb[0].mxu0
        %v615 = vadd.f32 %v517, %v614
        %v616 = vpop.f32.mrb[0].mxu0
        %v617 = vadd.f32 %v517, %v616
        %618 = vmatprep.mubr.f32.mxu0 0.0
        %619 = vmatmul.mubr.f32.gmra.mrb[0].mxu0 %v534
        %v620 = vpop.f32.mrb[0].mxu0
        %v621 = vadd.f32 %v522, %v620
        %v622 = vpop.f32.mrb[0].mxu0
        %v623 = vadd.f32 %v522, %v622
        %624 = vdwg.mxu0
        %625 = vxpose.xlu0.b32.start [1/16] %v411, 128
        %626 = vxpose.xlu0.b32.cont [2/16] 0.0, 128
        %627 = vxpose.xlu0.b32.cont [3/16] 0.0, 128
        %628 = vxpose.xlu0.b32.cont [4/16] 0.0, 128
        %629 = vxpose.xlu0.b32.cont [5/16] 0.0, 128
        %630 = vxpose.xlu0.b32.cont [6/16] 0.0, 128
        %631 = vxpose.xlu0.b32.cont [7/16] 0.0, 128
        %632 = vxpose.xlu0.b32.cont [8/16] 0.0, 128
        %633 = vxpose.xlu0.b32.cont [9/16] 0.0, 128
        %634 = vxpose.xlu0.b32.cont [10/16] 0.0, 128
        %635 = vxpose.xlu0.b32.cont [11/16] 0.0, 128
        %636 = vxpose.xlu0.b32.cont [12/16] 0.0, 128
        %637 = vxpose.xlu0.b32.cont [13/16] 0.0, 128
        %638 = vxpose.xlu0.b32.cont [14/16] 0.0, 128
        %639 = vxpose.xlu0.b32.cont [15/16] 0.0, 128
        %640 = vxpose.xlu0.b32.end [16/16] 0.0, 128
        %v641 = vpop.trf.xlu0
        %v642 = vpop.trf.xlu0
        %v643 = vpop.trf.xlu0
        %v644 = vpop.trf.xlu0
        %v645 = vpop.trf.xlu0
        %v646 = vpop.trf.xlu0
        %v647 = vpop.trf.xlu0
        %v648 = vpop.trf.xlu0
        %v649 = vpop.trf.xlu0
        %v650 = vpop.trf.xlu0
        %v651 = vpop.trf.xlu0
        %v652 = vpop.trf.xlu0
        %v653 = vpop.trf.xlu0
        %v654 = vpop.trf.xlu0
        %v655 = vpop.trf.xlu0
        %v656 = vpop.trf.xlu0
        %657 = vxpose.xlu0.b32.start [1/16] %v413, 128
        %658 = vxpose.xlu0.b32.cont [2/16] 0.0, 128
        %659 = vxpose.xlu0.b32.cont [3/16] 0.0, 128
        %660 = vxpose.xlu0.b32.cont [4/16] 0.0, 128
        %661 = vxpose.xlu0.b32.cont [5/16] 0.0, 128
        %662 = vxpose.xlu0.b32.cont [6/16] 0.0, 128
        %663 = vxpose.xlu0.b32.cont [7/16] 0.0, 128
        %664 = vxpose.xlu0.b32.cont [8/16] 0.0, 128
        %665 = vxpose.xlu0.b32.cont [9/16] 0.0, 128
        %666 = vxpose.xlu0.b32.cont [10/16] 0.0, 128
        %667 = vxpose.xlu0.b32.cont [11/16] 0.0, 128
        %668 = vxpose.xlu0.b32.cont [12/16] 0.0, 128
        %669 = vxpose.xlu0.b32.cont [13/16] 0.0, 128
        %670 = vxpose.xlu0.b32.cont [14/16] 0.0, 128
        %671 = vxpose.xlu0.b32.cont [15/16] 0.0, 128
        %672 = vxpose.xlu0.b32.end [16/16] 0.0, 128
        %v673 = vpop.trf.xlu0
        %v674 = vpop.trf.xlu0
        %v675 = vpop.trf.xlu0
        %v676 = vpop.trf.xlu0
        %v677 = vpop.trf.xlu0
        %v678 = vpop.trf.xlu0
        %v679 = vpop.trf.xlu0
        %v680 = vpop.trf.xlu0
        %v681 = vpop.trf.xlu0
        %v682 = vpop.trf.xlu0
        %v683 = vpop.trf.xlu0
        %v684 = vpop.trf.xlu0
        %v685 = vpop.trf.xlu0
        %v686 = vpop.trf.xlu0
        %v687 = vpop.trf.xlu0
        %v688 = vpop.trf.xlu0
        %vm689 = vcmask 31744
        %v691 = vsel %vm689, %v641, 0
        %v694 = vsel %vm689, %v642, 0
        %v697 = vsel %vm689, %v643, 0
        %v700 = vsel %vm689, %v644, 0
        %v703 = vsel %vm689, %v645, 0
        %v706 = vsel %vm689, %v646, 0
        %v709 = vsel %vm689, %v647, 0
        %v712 = vsel %vm689, %v648, 0
        %v715 = vsel %vm689, %v649, 0
        %v718 = vsel %vm689, %v650, 0
        %v721 = vsel %vm689, %v651, 0
        %v724 = vsel %vm689, %v652, 0
        %v727 = vsel %vm689, %v653, 0
        %v730 = vsel %vm689, %v654, 0
        %v733 = vsel %vm689, %v655, 0
        %v736 = vsel %vm689, %v656, 0
        %v739 = vsel %vm689, %v673, 0
        %v742 = vsel %vm689, %v674, 0
        %v745 = vsel %vm689, %v675, 0
        %v748 = vsel %vm689, %v676, 0
        %v751 = vsel %vm689, %v677, 0
        %v754 = vsel %vm689, %v678, 0
        %v757 = vsel %vm689, %v679, 0
        %v760 = vsel %vm689, %v680, 0
        %v763 = vsel %vm689, %v681, 0
        %v766 = vsel %vm689, %v682, 0
        %v769 = vsel %vm689, %v683, 0
        %v772 = vsel %vm689, %v684, 0
        %v775 = vsel %vm689, %v685, 0
        %v778 = vsel %vm689, %v686, 0
        %v781 = vsel %vm689, %v687, 0
        %v784 = vsel %vm689, %v688, 0
        %vm786 = vcmask 1043456
        %v788 = vsel %vm786, %v492, 0
        %v791 = vsel %vm786, %v494, 0
        %793 = vmatprep.subr.mxu0 %v791
        %794 = vmatpush1.msra.mxu0 %v788
        %795 = vmatprep.subr.mxu0 0.0
        %796 = vmatpush1.msra.mxu0 0.0
        %797 = vmatprep.subr.mxu0 0.0
        %798 = vmatpush1.msra.mxu0 0.0
        %799 = vmatprep.subr.mxu0 0.0
        %800 = vmatpush1.msra.mxu0 0.0
        %801 = vmatprep.subr.mxu0 0.0
        %802 = vmatpush1.msra.mxu0 0.0
        %803 = vmatprep.subr.mxu0 0.0
        %804 = vmatpush1.msra.mxu0 0.0
        %805 = vmatprep.subr.mxu0 0.0
        %806 = vmatpush1.msra.mxu0 0.0
        %807 = vmatprep.subr.mxu0 0.0
        %808 = vmatpush1.msra.mxu0 0.0
        %809 = vmatprep.subr.mxu0 0.0
        %810 = vmatpush1.msra.mxu0 0.0
        %811 = vmatprep.subr.mxu0 0.0
        %812 = vmatpush1.msra.mxu0 0.0
        %813 = vmatprep.subr.mxu0 0.0
        %814 = vmatpush1.msra.mxu0 0.0
        %815 = vmatprep.subr.mxu0 0.0
        %816 = vmatpush1.msra.mxu0 0.0
        %817 = vmatprep.subr.mxu0 0.0
        %818 = vmatpush1.msra.mxu0 0.0
        %819 = vmatprep.subr.mxu0 0.0
        %820 = vmatpush1.msra.mxu0 0.0
        %821 = vmatprep.subr.mxu0 0.0
        %822 = vmatpush1.msra.mxu0 0.0
        %823 = vmatprep.subr.mxu0 0.0
        %824 = vmatpush1.msra.mxu0 0.0
        %825 = vmatprep.subr.mxu0 0.0
        %826 = vmatpush1.msra.mxu0 0.0
        %827 = vmatprep.subr.mxu0 0.0
        %828 = vmatpush1.msra.mxu0 0.0
        %829 = vmatprep.subr.mxu0 0.0
        %830 = vmatpush1.msra.mxu0 0.0
        %831 = vmatprep.subr.mxu0 0.0
        %832 = vmatpush1.msra.mxu0 0.0
        %833 = vmatprep.subr.mxu0 0.0
        %834 = vmatpush1.msra.mxu0 0.0
        %835 = vmatprep.subr.mxu0 0.0
        %836 = vmatpush1.msra.mxu0 0.0
        %837 = vmatprep.subr.mxu0 0.0
        %838 = vmatpush1.msra.mxu0 0.0
        %839 = vmatprep.subr.mxu0 0.0
        %840 = vmatpush1.msra.mxu0 0.0
        %841 = vmatprep.subr.mxu0 0.0
        %842 = vmatpush1.msra.mxu0 0.0
        %843 = vmatprep.subr.mxu0 0.0
        %844 = vmatpush1.msra.mxu0 0.0
        %845 = vmatprep.subr.mxu0 0.0
        %846 = vmatpush1.msra.mxu0 0.0
        %847 = vmatprep.subr.mxu0 0.0
        %848 = vmatpush1.msra.mxu0 0.0
        %849 = vmatprep.subr.mxu0 0.0
        %850 = vmatpush1.msra.mxu0 0.0
        %851 = vmatprep.subr.mxu0 0.0
        %852 = vmatpush1.msra.mxu0 0.0
        %853 = vmatprep.subr.mxu0 0.0
        %854 = vmatpush1.msra.mxu0 0.0
        %855 = vmatprep.subr.mxu0 0.0
        %856 = vmatpush1.msra.mxu0 0.0
        %857 = vmatprep.mubr.f32.mxu0 0.0
        %858 = vmatmul.mubr.f32.gmra.mrb[0].mxu0 %v691
        %v859 = vpop.f32.mrb[0].mxu0
        %v860 = vadd.f32 0.0, %v859
        %v861 = vpop.f32.mrb[0].mxu0
        %v862 = vadd.f32 0.0, %v861
        %863 = vmatprep.mubr.f32.mxu0 0.0
        %864 = vmatmul.mubr.f32.gmra.mrb[0].mxu0 %v694
        %v865 = vpop.f32.mrb[0].mxu0
        %v866 = vadd.f32 0.0, %v865
        %v867 = vpop.f32.mrb[0].mxu0
        %v868 = vadd.f32 0.0, %v867
        %869 = vmatprep.mubr.f32.mxu0 0.0
        %870 = vmatmul.mubr.f32.gmra.mrb[0].mxu0 %v697
        %v871 = vpop.f32.mrb[0].mxu0
        %v872 = vadd.f32 0.0, %v871
        %v873 = vpop.f32.mrb[0].mxu0
        %v874 = vadd.f32 0.0, %v873
        %875 = vmatprep.mubr.f32.mxu0 0.0
        %876 = vmatmul.mubr.f32.gmra.mrb[0].mxu0 %v700
        %v877 = vpop.f32.mrb[0].mxu0
        %v878 = vadd.f32 0.0, %v877
        %v879 = vpop.f32.mrb[0].mxu0
        %v880 = vadd.f32 0.0, %v879
        %881 = vmatprep.mubr.f32.mxu0 0.0
        %882 = vmatmul.mubr.f32.gmra.mrb[0].mxu0 %v703
        %v883 = vpop.f32.mrb[0].mxu0
        %v884 = vadd.f32 0.0, %v883
        %v885 = vpop.f32.mrb[0].mxu0
        %v886 = vadd.f32 0.0, %v885
        %887 = vmatprep.mubr.f32.mxu0 0.0
        %888 = vmatmul.mubr.f32.gmra.mrb[0].mxu0 %v706
        %v889 = vpop.f32.mrb[0].mxu0
        %v890 = vadd.f32 0.0, %v889
        %v891 = vpop.f32.mrb[0].mxu0
        %v892 = vadd.f32 0.0, %v891
        %893 = vmatprep.mubr.f32.mxu0 0.0
        %894 = vmatmul.mubr.f32.gmra.mrb[0].mxu0 %v709
        %v895 = vpop.f32.mrb[0].mxu0
        %v896 = vadd.f32 0.0, %v895
        %v897 = vpop.f32.mrb[0].mxu0
        %v898 = vadd.f32 0.0, %v897
        %899 = vmatprep.mubr.f32.mxu0 0.0
        %900 = vmatmul.mubr.f32.gmra.mrb[0].mxu0 %v712
        %v901 = vpop.f32.mrb[0].mxu0
        %v902 = vadd.f32 0.0, %v901
        %v903 = vpop.f32.mrb[0].mxu0
        %v904 = vadd.f32 0.0, %v903
        %905 = vmatprep.mubr.f32.mxu0 0.0
        %906 = vmatmul.mubr.f32.gmra.mrb[0].mxu0 %v715
        %v907 = vpop.f32.mrb[0].mxu0
        %v908 = vadd.f32 0.0, %v907
        %v909 = vpop.f32.mrb[0].mxu0
        %v910 = vadd.f32 0.0, %v909
        %911 = vmatprep.mubr.f32.mxu0 0.0
        %912 = vmatmul.mubr.f32.gmra.mrb[0].mxu0 %v718
        %v913 = vpop.f32.mrb[0].mxu0
        %v914 = vadd.f32 0.0, %v913
        %v915 = vpop.f32.mrb[0].mxu0
        %v916 = vadd.f32 0.0, %v915
        %917 = vmatprep.mubr.f32.mxu0 0.0
        %918 = vmatmul.mubr.f32.gmra.mrb[0].mxu0 %v721
        %v919 = vpop.f32.mrb[0].mxu0
        %v920 = vadd.f32 0.0, %v919
        %v921 = vpop.f32.mrb[0].mxu0
        %v922 = vadd.f32 0.0, %v921
        %923 = vmatprep.mubr.f32.mxu0 0.0
        %924 = vmatmul.mubr.f32.gmra.mrb[0].mxu0 %v724
        %v925 = vpop.f32.mrb[0].mxu0
        %v926 = vadd.f32 0.0, %v925
        %v927 = vpop.f32.mrb[0].mxu0
        %v928 = vadd.f32 0.0, %v927
        %929 = vmatprep.mubr.f32.mxu0 0.0
        %930 = vmatmul.mubr.f32.gmra.mrb[0].mxu0 %v727
        %v931 = vpop.f32.mrb[0].mxu0
        %v932 = vadd.f32 0.0, %v931
        %v933 = vpop.f32.mrb[0].mxu0
        %v934 = vadd.f32 0.0, %v933
        %935 = vmatprep.mubr.f32.mxu0 0.0
        %936 = vmatmul.mubr.f32.gmra.mrb[0].mxu0 %v730
        %v937 = vpop.f32.mrb[0].mxu0
        %v938 = vadd.f32 0.0, %v937
        %v939 = vpop.f32.mrb[0].mxu0
        %v940 = vadd.f32 0.0, %v939
        %941 = vmatprep.mubr.f32.mxu0 0.0
        %942 = vmatmul.mubr.f32.gmra.mrb[0].mxu0 %v733
        %v943 = vpop.f32.mrb[0].mxu0
        %v944 = vadd.f32 0.0, %v943
        %v945 = vpop.f32.mrb[0].mxu0
        %v946 = vadd.f32 0.0, %v945
        %947 = vmatprep.mubr.f32.mxu0 0.0
        %948 = vmatmul.mubr.f32.gmra.mrb[0].mxu0 %v736
        %v949 = vpop.f32.mrb[0].mxu0
        %v950 = vadd.f32 0.0, %v949
        %v951 = vpop.f32.mrb[0].mxu0
        %v952 = vadd.f32 0.0, %v951
        %953 = vmatprep.mubr.f32.mxu0 0.0
        %954 = vmatmul.mubr.f32.gmra.mrb[0].mxu0 %v739
        %v955 = vpop.f32.mrb[0].mxu0
        %v956 = vadd.f32 0.0, %v955
        %v957 = vpop.f32.mrb[0].mxu0
        %v958 = vadd.f32 0.0, %v957
        %959 = vmatprep.mubr.f32.mxu0 0.0
        %960 = vmatmul.mubr.f32.gmra.mrb[0].mxu0 %v742
        %v961 = vpop.f32.mrb[0].mxu0
        %v962 = vadd.f32 0.0, %v961
        %v963 = vpop.f32.mrb[0].mxu0
        %v964 = vadd.f32 0.0, %v963
        %965 = vmatprep.mubr.f32.mxu0 0.0
        %966 = vmatmul.mubr.f32.gmra.mrb[0].mxu0 %v745
        %v967 = vpop.f32.mrb[0].mxu0
        %v968 = vadd.f32 0.0, %v967
        %v969 = vpop.f32.mrb[0].mxu0
        %v970 = vadd.f32 0.0, %v969
        %971 = vmatprep.mubr.f32.mxu0 0.0
        %972 = vmatmul.mubr.f32.gmra.mrb[0].mxu0 %v748
        %v973 = vpop.f32.mrb[0].mxu0
        %v974 = vadd.f32 0.0, %v973
        %v975 = vpop.f32.mrb[0].mxu0
        %v976 = vadd.f32 0.0, %v975
        %977 = vmatprep.mubr.f32.mxu0 0.0
        %978 = vmatmul.mubr.f32.gmra.mrb[0].mxu0 %v751
        %v979 = vpop.f32.mrb[0].mxu0
        %v980 = vadd.f32 0.0, %v979
        %v981 = vpop.f32.mrb[0].mxu0
        %v982 = vadd.f32 0.0, %v981
        %983 = vmatprep.mubr.f32.mxu0 0.0
        %984 = vmatmul.mubr.f32.gmra.mrb[0].mxu0 %v754
        %v985 = vpop.f32.mrb[0].mxu0
        %v986 = vadd.f32 0.0, %v985
        %v987 = vpop.f32.mrb[0].mxu0
        %v988 = vadd.f32 0.0, %v987
        %989 = vmatprep.mubr.f32.mxu0 0.0
        %990 = vmatmul.mubr.f32.gmra.mrb[0].mxu0 %v757
        %v991 = vpop.f32.mrb[0].mxu0
        %v992 = vadd.f32 0.0, %v991
        %v993 = vpop.f32.mrb[0].mxu0
        %v994 = vadd.f32 0.0, %v993
        %995 = vmatprep.mubr.f32.mxu0 0.0
        %996 = vmatmul.mubr.f32.gmra.mrb[0].mxu0 %v760
        %v997 = vpop.f32.mrb[0].mxu0
        %v998 = vadd.f32 0.0, %v997
        %v999 = vpop.f32.mrb[0].mxu0
        %v1000 = vadd.f32 0.0, %v999
        %1001 = vmatprep.mubr.f32.mxu0 0.0
        %1002 = vmatmul.mubr.f32.gmra.mrb[0].mxu0 %v763
        %v1003 = vpop.f32.mrb[0].mxu0
        %v1004 = vadd.f32 0.0, %v1003
        %v1005 = vpop.f32.mrb[0].mxu0
        %v1006 = vadd.f32 0.0, %v1005
        %1007 = vmatprep.mubr.f32.mxu0 0.0
        %1008 = vmatmul.mubr.f32.gmra.mrb[0].mxu0 %v766
        %v1009 = vpop.f32.mrb[0].mxu0
        %v1010 = vadd.f32 0.0, %v1009
        %v1011 = vpop.f32.mrb[0].mxu0
        %v1012 = vadd.f32 0.0, %v1011
        %1013 = vmatprep.mubr.f32.mxu0 0.0
        %1014 = vmatmul.mubr.f32.gmra.mrb[0].mxu0 %v769
        %v1015 = vpop.f32.mrb[0].mxu0
        %v1016 = vadd.f32 0.0, %v1015
        %v1017 = vpop.f32.mrb[0].mxu0
        %v1018 = vadd.f32 0.0, %v1017
        %1019 = vmatprep.mubr.f32.mxu0 0.0
        %1020 = vmatmul.mubr.f32.gmra.mrb[0].mxu0 %v772
        %v1021 = vpop.f32.mrb[0].mxu0
        %v1022 = vadd.f32 0.0, %v1021
        %v1023 = vpop.f32.mrb[0].mxu0
        %v1024 = vadd.f32 0.0, %v1023
        %1025 = vmatprep.mubr.f32.mxu0 0.0
        %1026 = vmatmul.mubr.f32.gmra.mrb[0].mxu0 %v775
        %v1027 = vpop.f32.mrb[0].mxu0
        %v1028 = vadd.f32 0.0, %v1027
        %v1029 = vpop.f32.mrb[0].mxu0
        %v1030 = vadd.f32 0.0, %v1029
        %1031 = vmatprep.mubr.f32.mxu0 0.0
        %1032 = vmatmul.mubr.f32.gmra.mrb[0].mxu0 %v778
        %v1033 = vpop.f32.mrb[0].mxu0
        %v1034 = vadd.f32 0.0, %v1033
        %v1035 = vpop.f32.mrb[0].mxu0
        %v1036 = vadd.f32 0.0, %v1035
        %1037 = vmatprep.mubr.f32.mxu0 0.0
        %1038 = vmatmul.mubr.f32.gmra.mrb[0].mxu0 %v781
        %v1039 = vpop.f32.mrb[0].mxu0
        %v1040 = vadd.f32 0.0, %v1039
        %v1041 = vpop.f32.mrb[0].mxu0
        %v1042 = vadd.f32 0.0, %v1041
        %1043 = vmatprep.mubr.f32.mxu0 0.0
        %1044 = vmatmul.mubr.f32.gmra.mrb[0].mxu0 %v784
        %v1045 = vpop.f32.mrb[0].mxu0
        %v1046 = vadd.f32 0.0, %v1045
        %v1047 = vpop.f32.mrb[0].mxu0
        %v1048 = vadd.f32 0.0, %v1047
        %1049 = vdwg.mxu0
        %v1050 = vmax.f32 %v860, %v862
        %1051 = vmax.xlane.f32.xlu0 %v1050
        %v1052 = vpop.xlane.xlu0 %1051
        %v1053 = vmax.f32 %v866, %v868
        %1054 = vmax.xlane.f32.xlu0 %v1053
        %v1055 = vpop.xlane.xlu0 %1054
        %v1056 = vmax.f32 %v872, %v874
        %1057 = vmax.xlane.f32.xlu0 %v1056
        %v1058 = vpop.xlane.xlu0 %1057
        %v1059 = vmax.f32 %v878, %v880
        %1060 = vmax.xlane.f32.xlu0 %v1059
        %v1061 = vpop.xlane.xlu0 %1060
        %v1062 = vmax.f32 %v884, %v886
        %1063 = vmax.xlane.f32.xlu0 %v1062
        %v1064 = vpop.xlane.xlu0 %1063
        %v1065 = vmax.f32 %v890, %v892
        %1066 = vmax.xlane.f32.xlu0 %v1065
        %v1067 = vpop.xlane.xlu0 %1066
        %v1068 = vmax.f32 %v896, %v898
        %1069 = vmax.xlane.f32.xlu0 %v1068
        %v1070 = vpop.xlane.xlu0 %1069
        %v1071 = vmax.f32 %v902, %v904
        %1072 = vmax.xlane.f32.xlu0 %v1071
        %v1073 = vpop.xlane.xlu0 %1072
        %v1074 = vmax.f32 %v908, %v910
        %1075 = vmax.xlane.f32.xlu0 %v1074
        %v1076 = vpop.xlane.xlu0 %1075
        %v1077 = vmax.f32 %v914, %v916
        %1078 = vmax.xlane.f32.xlu0 %v1077
        %v1079 = vpop.xlane.xlu0 %1078
        %v1080 = vmax.f32 %v920, %v922
        %1081 = vmax.xlane.f32.xlu0 %v1080
        %v1082 = vpop.xlane.xlu0 %1081
        %v1083 = vmax.f32 %v926, %v928
        %1084 = vmax.xlane.f32.xlu0 %v1083
        %v1085 = vpop.xlane.xlu0 %1084
        %v1086 = vmax.f32 %v932, %v934
        %1087 = vmax.xlane.f32.xlu0 %v1086
        %v1088 = vpop.xlane.xlu0 %1087
        %v1089 = vmax.f32 %v938, %v940
        %1090 = vmax.xlane.f32.xlu0 %v1089
        %v1091 = vpop.xlane.xlu0 %1090
        %v1092 = vmax.f32 %v944, %v946
        %1093 = vmax.xlane.f32.xlu0 %v1092
        %v1094 = vpop.xlane.xlu0 %1093
        %v1095 = vmax.f32 %v950, %v952
        %1096 = vmax.xlane.f32.xlu0 %v1095
        %v1097 = vpop.xlane.xlu0 %1096
        %v1098 = vmax.f32 %v956, %v958
        %1099 = vmax.xlane.f32.xlu0 %v1098
        %v1100 = vpop.xlane.xlu0 %1099
        %v1101 = vmax.f32 %v962, %v964
        %1102 = vmax.xlane.f32.xlu0 %v1101
        %v1103 = vpop.xlane.xlu0 %1102
        %v1104 = vmax.f32 %v968, %v970
        %1105 = vmax.xlane.f32.xlu0 %v1104
        %v1106 = vpop.xlane.xlu0 %1105
        %v1107 = vmax.f32 %v974, %v976
        %1108 = vmax.xlane.f32.xlu0 %v1107
        %v1109 = vpop.xlane.xlu0 %1108
        %v1110 = vmax.f32 %v980, %v982
        %1111 = vmax.xlane.f32.xlu0 %v1110
        %v1112 = vpop.xlane.xlu0 %1111
        %v1113 = vmax.f32 %v986, %v988
        %1114 = vmax.xlane.f32.xlu0 %v1113
        %v1115 = vpop.xlane.xlu0 %1114
        %v1116 = vmax.f32 %v992, %v994
        %1117 = vmax.xlane.f32.xlu0 %v1116
        %v1118 = vpop.xlane.xlu0 %1117
        %v1119 = vmax.f32 %v998, %v1000
        %1120 = vmax.xlane.f32.xlu0 %v1119
        %v1121 = vpop.xlane.xlu0 %1120
        %v1122 = vmax.f32 %v1004, %v1006
        %1123 = vmax.xlane.f32.xlu0 %v1122
        %v1124 = vpop.xlane.xlu0 %1123
        %v1125 = vmax.f32 %v1010, %v1012
        %1126 = vmax.xlane.f32.xlu0 %v1125
        %v1127 = vpop.xlane.xlu0 %1126
        %v1128 = vmax.f32 %v1016, %v1018
        %1129 = vmax.xlane.f32.xlu0 %v1128
        %v1130 = vpop.xlane.xlu0 %1129
        %v1131 = vmax.f32 %v1022, %v1024
        %1132 = vmax.xlane.f32.xlu0 %v1131
        %v1133 = vpop.xlane.xlu0 %1132
        %v1134 = vmax.f32 %v1028, %v1030
        %1135 = vmax.xlane.f32.xlu0 %v1134
        %v1136 = vpop.xlane.xlu0 %1135
        %v1137 = vmax.f32 %v1034, %v1036
        %1138 = vmax.xlane.f32.xlu0 %v1137
        %v1139 = vpop.xlane.xlu0 %1138
        %v1140 = vmax.f32 %v1040, %v1042
        %1141 = vmax.xlane.f32.xlu0 %v1140
        %v1142 = vpop.xlane.xlu0 %1141
        %v1143 = vmax.f32 %v1046, %v1048
        %1144 = vmax.xlane.f32.xlu0 %v1143
        %v1145 = vpop.xlane.xlu0 %1144
        %v1146 = vsub.f32 %v860, %v1052
        %v1147 = vsub.f32 %v862, %v1052
        %v1148 = vsub.f32 %v866, %v1055
        %v1149 = vsub.f32 %v868, %v1055
        %v1150 = vsub.f32 %v872, %v1058
        %v1151 = vsub.f32 %v874, %v1058
        %v1152 = vsub.f32 %v878, %v1061
        %v1153 = vsub.f32 %v880, %v1061
        %v1154 = vsub.f32 %v884, %v1064
        %v1155 = vsub.f32 %v886, %v1064
        %v1156 = vsub.f32 %v890, %v1067
        %v1157 = vsub.f32 %v892, %v1067
        %v1158 = vsub.f32 %v896, %v1070
        %v1159 = vsub.f32 %v898, %v1070
        %v1160 = vsub.f32 %v902, %v1073
        %v1161 = vsub.f32 %v904, %v1073
        %v1162 = vsub.f32 %v908, %v1076
        %v1163 = vsub.f32 %v910, %v1076
        %v1164 = vsub.f32 %v914, %v1079
        %v1165 = vsub.f32 %v916, %v1079
        %v1166 = vsub.f32 %v920, %v1082
        %v1167 = vsub.f32 %v922, %v1082
        %v1168 = vsub.f32 %v926, %v1085
        %v1169 = vsub.f32 %v928, %v1085
        %v1170 = vsub.f32 %v932, %v1088
        %v1171 = vsub.f32 %v934, %v1088
        %v1172 = vsub.f32 %v938, %v1091
        %v1173 = vsub.f32 %v940, %v1091
        %v1174 = vsub.f32 %v944, %v1094
        %v1175 = vsub.f32 %v946, %v1094
        %v1176 = vsub.f32 %v950, %v1097
        %v1177 = vsub.f32 %v952, %v1097
        %v1178 = vsub.f32 %v956, %v1100
        %v1179 = vsub.f32 %v958, %v1100
        %v1180 = vsub.f32 %v962, %v1103
        %v1181 = vsub.f32 %v964, %v1103
        %v1182 = vsub.f32 %v968, %v1106
        %v1183 = vsub.f32 %v970, %v1106
        %v1184 = vsub.f32 %v974, %v1109
        %v1185 = vsub.f32 %v976, %v1109
        %v1186 = vsub.f32 %v980, %v1112
        %v1187 = vsub.f32 %v982, %v1112
        %v1188 = vsub.f32 %v986, %v1115
        %v1189 = vsub.f32 %v988, %v1115
        %v1190 = vsub.f32 %v992, %v1118
        %v1191 = vsub.f32 %v994, %v1118
        %v1192 = vsub.f32 %v998, %v1121
        %v1193 = vsub.f32 %v1000, %v1121
        %v1194 = vsub.f32 %v1004, %v1124
        %v1195 = vsub.f32 %v1006, %v1124
        %v1196 = vsub.f32 %v1010, %v1127
        %v1197 = vsub.f32 %v1012, %v1127
        %v1198 = vsub.f32 %v1016, %v1130
        %v1199 = vsub.f32 %v1018, %v1130
        %v1200 = vsub.f32 %v1022, %v1133
        %v1201 = vsub.f32 %v1024, %v1133
        %v1202 = vsub.f32 %v1028, %v1136
        %v1203 = vsub.f32 %v1030, %v1136
        %v1204 = vsub.f32 %v1034, %v1139
        %v1205 = vsub.f32 %v1036, %v1139
        %v1206 = vsub.f32 %v1040, %v1142
        %v1207 = vsub.f32 %v1042, %v1142
        %v1208 = vsub.f32 %v1046, %v1145
        %v1209 = vsub.f32 %v1048, %v1145
        %v1210 = vmul.f32 %v1146, 1.442695
        %v1211 = vpow.pop %v1210
        %v1212 = vmul.f32 %v1147, 1.442695
        %v1213 = vpow.pop %v1212
        %v1214 = vmul.f32 %v1148, 1.442695
        %v1215 = vpow.pop %v1214
        %v1216 = vmul.f32 %v1149, 1.442695
        %v1217 = vpow.pop %v1216
        %v1218 = vmul.f32 %v1150, 1.442695
        %v1219 = vpow.pop %v1218
        %v1220 = vmul.f32 %v1151, 1.442695
        %v1221 = vpow.pop %v1220
        %v1222 = vmul.f32 %v1152, 1.442695
        %v1223 = vpow.pop %v1222
        %v1224 = vmul.f32 %v1153, 1.442695
        %v1225 = vpow.pop %v1224
        %v1226 = vmul.f32 %v1154, 1.442695
        %v1227 = vpow.pop %v1226
        %v1228 = vmul.f32 %v1155, 1.442695
        %v1229 = vpow.pop %v1228
        %v1230 = vmul.f32 %v1156, 1.442695
        %v1231 = vpow.pop %v1230
        %v1232 = vmul.f32 %v1157, 1.442695
        %v1233 = vpow.pop %v1232
        %v1234 = vmul.f32 %v1158, 1.442695
        %v1235 = vpow.pop %v1234
        %v1236 = vmul.f32 %v1159, 1.442695
        %v1237 = vpow.pop %v1236
        %v1238 = vmul.f32 %v1160, 1.442695
        %v1239 = vpow.pop %v1238
        %v1240 = vmul.f32 %v1161, 1.442695
        %v1241 = vpow.pop %v1240
        %v1242 = vmul.f32 %v1162, 1.442695
        %v1243 = vpow.pop %v1242
        %v1244 = vmul.f32 %v1163, 1.442695
        %v1245 = vpow.pop %v1244
        %v1246 = vmul.f32 %v1164, 1.442695
        %v1247 = vpow.pop %v1246
        %v1248 = vmul.f32 %v1165, 1.442695
        %v1249 = vpow.pop %v1248
        %v1250 = vmul.f32 %v1166, 1.442695
        %v1251 = vpow.pop %v1250
        %v1252 = vmul.f32 %v1167, 1.442695
        %v1253 = vpow.pop %v1252
        %v1254 = vmul.f32 %v1168, 1.442695
        %v1255 = vpow.pop %v1254
        %v1256 = vmul.f32 %v1169, 1.442695
        %v1257 = vpow.pop %v1256
        %v1258 = vmul.f32 %v1170, 1.442695
        %v1259 = vpow.pop %v1258
        %v1260 = vmul.f32 %v1171, 1.442695
        %v1261 = vpow.pop %v1260
        %v1262 = vmul.f32 %v1172, 1.442695
        %v1263 = vpow.pop %v1262
        %v1264 = vmul.f32 %v1173, 1.442695
        %v1265 = vpow.pop %v1264
        %v1266 = vmul.f32 %v1174, 1.442695
        %v1267 = vpow.pop %v1266
        %v1268 = vmul.f32 %v1175, 1.442695
        %v1269 = vpow.pop %v1268
        %v1270 = vmul.f32 %v1176, 1.442695
        %v1271 = vpow.pop %v1270
        %v1272 = vmul.f32 %v1177, 1.442695
        %v1273 = vpow.pop %v1272
        %v1274 = vmul.f32 %v1178, 1.442695
        %v1275 = vpow.pop %v1274
        %v1276 = vmul.f32 %v1179, 1.442695
        %v1277 = vpow.pop %v1276
        %v1278 = vmul.f32 %v1180, 1.442695
        %v1279 = vpow.pop %v1278
        %v1280 = vmul.f32 %v1181, 1.442695
        %v1281 = vpow.pop %v1280
        %v1282 = vmul.f32 %v1182, 1.442695
        %v1283 = vpow.pop %v1282
        %v1284 = vmul.f32 %v1183, 1.442695
        %v1285 = vpow.pop %v1284
        %v1286 = vmul.f32 %v1184, 1.442695
        %v1287 = vpow.pop %v1286
        %v1288 = vmul.f32 %v1185, 1.442695
        %v1289 = vpow.pop %v1288
        %v1290 = vmul.f32 %v1186, 1.442695
        %v1291 = vpow.pop %v1290
        %v1292 = vmul.f32 %v1187, 1.442695
        %v1293 = vpow.pop %v1292
        %v1294 = vmul.f32 %v1188, 1.442695
        %v1295 = vpow.pop %v1294
        %v1296 = vmul.f32 %v1189, 1.442695
        %v1297 = vpow.pop %v1296
        %v1298 = vmul.f32 %v1190, 1.442695
        %v1299 = vpow.pop %v1298
        %v1300 = vmul.f32 %v1191, 1.442695
        %v1301 = vpow.pop %v1300
        %v1302 = vmul.f32 %v1192, 1.442695
        %v1303 = vpow.pop %v1302
        %v1304 = vmul.f32 %v1193, 1.442695
        %v1305 = vpow.pop %v1304
        %v1306 = vmul.f32 %v1194, 1.442695
        %v1307 = vpow.pop %v1306
        %v1308 = vmul.f32 %v1195, 1.442695
        %v1309 = vpow.pop %v1308
        %v1310 = vmul.f32 %v1196, 1.442695
        %v1311 = vpow.pop %v1310
        %v1312 = vmul.f32 %v1197, 1.442695
        %v1313 = vpow.pop %v1312
        %v1314 = vmul.f32 %v1198, 1.442695
        %v1315 = vpow.pop %v1314
        %v1316 = vmul.f32 %v1199, 1.442695
        %v1317 = vpow.pop %v1316
        %v1318 = vmul.f32 %v1200, 1.442695
        %v1319 = vpow.pop %v1318
        %v1320 = vmul.f32 %v1201, 1.442695
        %v1321 = vpow.pop %v1320
        %v1322 = vmul.f32 %v1202, 1.442695
        %v1323 = vpow.pop %v1322
        %v1324 = vmul.f32 %v1203, 1.442695
        %v1325 = vpow.pop %v1324
        %v1326 = vmul.f32 %v1204, 1.442695
        %v1327 = vpow.pop %v1326
        %v1328 = vmul.f32 %v1205, 1.442695
        %v1329 = vpow.pop %v1328
        %v1330 = vmul.f32 %v1206, 1.442695
        %v1331 = vpow.pop %v1330
        %v1332 = vmul.f32 %v1207, 1.442695
        %v1333 = vpow.pop %v1332
        %v1334 = vmul.f32 %v1208, 1.442695
        %v1335 = vpow.pop %v1334
        %v1336 = vmul.f32 %v1209, 1.442695
        %v1337 = vpow.pop %v1336
        %v1338 = vadd.f32 %v1211, %v1213
        %1339 = vadd.xlane.f32.xlu0 %v1338
        %v1340 = vpop.xlane.xlu0 %1339
        %v1341 = vadd.f32 %v1215, %v1217
        %1342 = vadd.xlane.f32.xlu0 %v1341
        %v1343 = vpop.xlane.xlu0 %1342
        %v1344 = vadd.f32 %v1219, %v1221
        %1345 = vadd.xlane.f32.xlu0 %v1344
        %v1346 = vpop.xlane.xlu0 %1345
        %v1347 = vadd.f32 %v1223, %v1225
        %1348 = vadd.xlane.f32.xlu0 %v1347
        %v1349 = vpop.xlane.xlu0 %1348
        %v1350 = vadd.f32 %v1227, %v1229
        %1351 = vadd.xlane.f32.xlu0 %v1350
        %v1352 = vpop.xlane.xlu0 %1351
        %v1353 = vadd.f32 %v1231, %v1233
        %1354 = vadd.xlane.f32.xlu0 %v1353
        %v1355 = vpop.xlane.xlu0 %1354
        %v1356 = vadd.f32 %v1235, %v1237
        %1357 = vadd.xlane.f32.xlu0 %v1356
        %v1358 = vpop.xlane.xlu0 %1357
        %v1359 = vadd.f32 %v1239, %v1241
        %1360 = vadd.xlane.f32.xlu0 %v1359
        %v1361 = vpop.xlane.xlu0 %1360
        %v1362 = vadd.f32 %v1243, %v1245
        %1363 = vadd.xlane.f32.xlu0 %v1362
        %v1364 = vpop.xlane.xlu0 %1363
        %v1365 = vadd.f32 %v1247, %v1249
        %1366 = vadd.xlane.f32.xlu0 %v1365
        %v1367 = vpop.xlane.xlu0 %1366
        %v1368 = vadd.f32 %v1251, %v1253
        %1369 = vadd.xlane.f32.xlu0 %v1368
        %v1370 = vpop.xlane.xlu0 %1369
        %v1371 = vadd.f32 %v1255, %v1257
        %1372 = vadd.xlane.f32.xlu0 %v1371
        %v1373 = vpop.xlane.xlu0 %1372
        %v1374 = vadd.f32 %v1259, %v1261
        %1375 = vadd.xlane.f32.xlu0 %v1374
        %v1376 = vpop.xlane.xlu0 %1375
        %v1377 = vadd.f32 %v1263, %v1265
        %1378 = vadd.xlane.f32.xlu0 %v1377
        %v1379 = vpop.xlane.xlu0 %1378
        %v1380 = vadd.f32 %v1267, %v1269
        %1381 = vadd.xlane.f32.xlu0 %v1380
        %v1382 = vpop.xlane.xlu0 %1381
        %v1383 = vadd.f32 %v1271, %v1273
        %1384 = vadd.xlane.f32.xlu0 %v1383
        %v1385 = vpop.xlane.xlu0 %1384
        %v1386 = vadd.f32 %v1275, %v1277
        %1387 = vadd.xlane.f32.xlu0 %v1386
        %v1388 = vpop.xlane.xlu0 %1387
        %v1389 = vadd.f32 %v1279, %v1281
        %1390 = vadd.xlane.f32.xlu0 %v1389
        %v1391 = vpop.xlane.xlu0 %1390
        %v1392 = vadd.f32 %v1283, %v1285
        %1393 = vadd.xlane.f32.xlu0 %v1392
        %v1394 = vpop.xlane.xlu0 %1393
        %v1395 = vadd.f32 %v1287, %v1289
        %1396 = vadd.xlane.f32.xlu0 %v1395
        %v1397 = vpop.xlane.xlu0 %1396
        %v1398 = vadd.f32 %v1291, %v1293
        %1399 = vadd.xlane.f32.xlu0 %v1398
        %v1400 = vpop.xlane.xlu0 %1399
        %v1401 = vadd.f32 %v1295, %v1297
        %1402 = vadd.xlane.f32.xlu0 %v1401
        %v1403 = vpop.xlane.xlu0 %1402
        %v1404 = vadd.f32 %v1299, %v1301
        %1405 = vadd.xlane.f32.xlu0 %v1404
        %v1406 = vpop.xlane.xlu0 %1405
        %v1407 = vadd.f32 %v1303, %v1305
        %1408 = vadd.xlane.f32.xlu0 %v1407
        %v1409 = vpop.xlane.xlu0 %1408
        %v1410 = vadd.f32 %v1307, %v1309
        %1411 = vadd.xlane.f32.xlu0 %v1410
        %v1412 = vpop.xlane.xlu0 %1411
        %v1413 = vadd.f32 %v1311, %v1313
        %1414 = vadd.xlane.f32.xlu0 %v1413
        %v1415 = vpop.xlane.xlu0 %1414
        %v1416 = vadd.f32 %v1315, %v1317
        %1417 = vadd.xlane.f32.xlu0 %v1416
        %v1418 = vpop.xlane.xlu0 %1417
        %v1419 = vadd.f32 %v1319, %v1321
        %1420 = vadd.xlane.f32.xlu0 %v1419
        %v1421 = vpop.xlane.xlu0 %1420
        %v1422 = vadd.f32 %v1323, %v1325
        %1423 = vadd.xlane.f32.xlu0 %v1422
        %v1424 = vpop.xlane.xlu0 %1423
        %v1425 = vadd.f32 %v1327, %v1329
        %1426 = vadd.xlane.f32.xlu0 %v1425
        %v1427 = vpop.xlane.xlu0 %1426
        %v1428 = vadd.f32 %v1331, %v1333
        %1429 = vadd.xlane.f32.xlu0 %v1428
        %v1430 = vpop.xlane.xlu0 %1429
        %v1431 = vadd.f32 %v1335, %v1337
        %1432 = vadd.xlane.f32.xlu0 %v1431
        %v1433 = vpop.xlane.xlu0 %1432
        %v1434 = vrcp.pop %v1340
        %v1435 = vrcp.pop %v1343
        %v1436 = vrcp.pop %v1346
        %v1437 = vrcp.pop %v1349
        %v1438 = vrcp.pop %v1352
        %v1439 = vrcp.pop %v1355
        %v1440 = vrcp.pop %v1358
        %v1441 = vrcp.pop %v1361
        %v1442 = vrcp.pop %v1364
        %v1443 = vrcp.pop %v1367
        %v1444 = vrcp.pop %v1370
        %v1445 = vrcp.pop %v1373
        %v1446 = vrcp.pop %v1376
        %v1447 = vrcp.pop %v1379
        %v1448 = vrcp.pop %v1382
        %v1449 = vrcp.pop %v1385
        %v1450 = vrcp.pop %v1388
        %v1451 = vrcp.pop %v1391
        %v1452 = vrcp.pop %v1394
        %v1453 = vrcp.pop %v1397
        %v1454 = vrcp.pop %v1400
        %v1455 = vrcp.pop %v1403
        %v1456 = vrcp.pop %v1406
        %v1457 = vrcp.pop %v1409
        %v1458 = vrcp.pop %v1412
        %v1459 = vrcp.pop %v1415
        %v1460 = vrcp.pop %v1418
        %v1461 = vrcp.pop %v1421
        %v1462 = vrcp.pop %v1424
        %v1463 = vrcp.pop %v1427
        %v1464 = vrcp.pop %v1430
        %v1465 = vrcp.pop %v1433
        %v1466 = vmul.f32 %v1211, %v1434
        %v1467 = vmul.f32 %v1213, %v1434
        %v1468 = vmul.f32 %v1215, %v1435
        %v1469 = vmul.f32 %v1217, %v1435
        %v1470 = vmul.f32 %v1219, %v1436
        %v1471 = vmul.f32 %v1221, %v1436
        %v1472 = vmul.f32 %v1223, %v1437
        %v1473 = vmul.f32 %v1225, %v1437
        %v1474 = vmul.f32 %v1227, %v1438
        %v1475 = vmul.f32 %v1229, %v1438
        %v1476 = vmul.f32 %v1231, %v1439
        %v1477 = vmul.f32 %v1233, %v1439
        %v1478 = vmul.f32 %v1235, %v1440
        %v1479 = vmul.f32 %v1237, %v1440
        %v1480 = vmul.f32 %v1239, %v1441
        %v1481 = vmul.f32 %v1241, %v1441
        %v1482 = vmul.f32 %v1243, %v1442
        %v1483 = vmul.f32 %v1245, %v1442
        %v1484 = vmul.f32 %v1247, %v1443
        %v1485 = vmul.f32 %v1249, %v1443
        %v1486 = vmul.f32 %v1251, %v1444
        %v1487 = vmul.f32 %v1253, %v1444
        %v1488 = vmul.f32 %v1255, %v1445
        %v1489 = vmul.f32 %v1257, %v1445
        %v1490 = vmul.f32 %v1259, %v1446
        %v1491 = vmul.f32 %v1261, %v1446
        %v1492 = vmul.f32 %v1263, %v1447
        %v1493 = vmul.f32 %v1265, %v1447
        %v1494 = vmul.f32 %v1267, %v1448
        %v1495 = vmul.f32 %v1269, %v1448
        %v1496 = vmul.f32 %v1271, %v1449
        %v1497 = vmul.f32 %v1273, %v1449
        %v1498 = vmul.f32 %v1275, %v1450
        %v1499 = vmul.f32 %v1277, %v1450
        %v1500 = vmul.f32 %v1279, %v1451
        %v1501 = vmul.f32 %v1281, %v1451
        %v1502 = vmul.f32 %v1283, %v1452
        %v1503 = vmul.f32 %v1285, %v1452
        %v1504 = vmul.f32 %v1287, %v1453
        %v1505 = vmul.f32 %v1289, %v1453
        %v1506 = vmul.f32 %v1291, %v1454
        %v1507 = vmul.f32 %v1293, %v1454
        %v1508 = vmul.f32 %v1295, %v1455
        %v1509 = vmul.f32 %v1297, %v1455
        %v1510 = vmul.f32 %v1299, %v1456
        %v1511 = vmul.f32 %v1301, %v1456
        %v1512 = vmul.f32 %v1303, %v1457
        %v1513 = vmul.f32 %v1305, %v1457
        %v1514 = vmul.f32 %v1307, %v1458
        %v1515 = vmul.f32 %v1309, %v1458
        %v1516 = vmul.f32 %v1311, %v1459
        %v1517 = vmul.f32 %v1313, %v1459
        %v1518 = vmul.f32 %v1315, %v1460
        %v1519 = vmul.f32 %v1317, %v1460
        %v1520 = vmul.f32 %v1319, %v1461
        %v1521 = vmul.f32 %v1321, %v1461
        %v1522 = vmul.f32 %v1323, %v1462
        %v1523 = vmul.f32 %v1325, %v1462
        %v1524 = vmul.f32 %v1327, %v1463
        %v1525 = vmul.f32 %v1329, %v1463
        %v1526 = vmul.f32 %v1331, %v1464
        %v1527 = vmul.f32 %v1333, %v1464
        %v1528 = vmul.f32 %v1335, %v1465
        %v1529 = vmul.f32 %v1337, %v1465
        %1530 = vmatprep.subr.mxu0 %v1467
        %1531 = vmatpush1.xpose.msra.mxu0 %v1466
        %1532 = vmatprep.subr.mxu0 %v1469
        %1533 = vmatpush1.xpose.msra.mxu0 %v1468
        %1534 = vmatprep.subr.mxu0 %v1471
        %1535 = vmatpush1.xpose.msra.mxu0 %v1470
        %1536 = vmatprep.subr.mxu0 %v1473
        %1537 = vmatpush1.xpose.msra.mxu0 %v1472
        %1538 = vmatprep.subr.mxu0 %v1475
        %1539 = vmatpush1.xpose.msra.mxu0 %v1474
        %1540 = vmatprep.subr.mxu0 %v1477
        %1541 = vmatpush1.xpose.msra.mxu0 %v1476
        %1542 = vmatprep.subr.mxu0 %v1479
        %1543 = vmatpush1.xpose.msra.mxu0 %v1478
        %1544 = vmatprep.subr.mxu0 %v1481
        %1545 = vmatpush1.xpose.msra.mxu0 %v1480
        %1546 = vmatprep.subr.mxu0 %v1483
        %1547 = vmatpush1.xpose.msra.mxu0 %v1482
        %1548 = vmatprep.subr.mxu0 %v1485
        %1549 = vmatpush1.xpose.msra.mxu0 %v1484
        %1550 = vmatprep.subr.mxu0 %v1487
        %1551 = vmatpush1.xpose.msra.mxu0 %v1486
        %1552 = vmatprep.subr.mxu0 %v1489
        %1553 = vmatpush1.xpose.msra.mxu0 %v1488
        %1554 = vmatprep.subr.mxu0 %v1491
        %1555 = vmatpush1.xpose.msra.mxu0 %v1490
        %1556 = vmatprep.subr.mxu0 %v1493
        %1557 = vmatpush1.xpose.msra.mxu0 %v1492
        %1558 = vmatprep.subr.mxu0 %v1495
        %1559 = vmatpush1.xpose.msra.mxu0 %v1494
        %1560 = vmatprep.subr.mxu0 %v1497
        %1561 = vmatpush1.xpose.msra.mxu0 %v1496
        %1562 = vmatprep.subr.mxu0 %v1499
        %1563 = vmatpush1.xpose.msra.mxu0 %v1498
        %1564 = vmatprep.subr.mxu0 %v1501
        %1565 = vmatpush1.xpose.msra.mxu0 %v1500
        %1566 = vmatprep.subr.mxu0 %v1503
        %1567 = vmatpush1.xpose.msra.mxu0 %v1502
        %1568 = vmatprep.subr.mxu0 %v1505
        %1569 = vmatpush1.xpose.msra.mxu0 %v1504
        %1570 = vmatprep.subr.mxu0 %v1507
        %1571 = vmatpush1.xpose.msra.mxu0 %v1506
        %1572 = vmatprep.subr.mxu0 %v1509
        %1573 = vmatpush1.xpose.msra.mxu0 %v1508
        %1574 = vmatprep.subr.mxu0 %v1511
        %1575 = vmatpush1.xpose.msra.mxu0 %v1510
        %1576 = vmatprep.subr.mxu0 %v1513
        %1577 = vmatpush1.xpose.msra.mxu0 %v1512
        %1578 = vmatprep.subr.mxu0 %v1515
        %1579 = vmatpush1.xpose.msra.mxu0 %v1514
        %1580 = vmatprep.subr.mxu0 %v1517
        %1581 = vmatpush1.xpose.msra.mxu0 %v1516
        %1582 = vmatprep.subr.mxu0 %v1519
        %1583 = vmatpush1.xpose.msra.mxu0 %v1518
        %1584 = vmatprep.subr.mxu0 %v1521
        %1585 = vmatpush1.xpose.msra.mxu0 %v1520
        %1586 = vmatprep.subr.mxu0 %v1523
        %1587 = vmatpush1.xpose.msra.mxu0 %v1522
        %1588 = vmatprep.subr.mxu0 %v1525
        %1589 = vmatpush1.xpose.msra.mxu0 %v1524
        %1590 = vmatprep.subr.mxu0 %v1527
        %1591 = vmatpush1.xpose.msra.mxu0 %v1526
        %1592 = vmatprep.subr.mxu0 %v1529
        %1593 = vmatpush1.xpose.msra.mxu0 %v1528
        %1594 = vmatprep.mubr.f32.mxu0 %v605
        %1595 = vmatmul.mubr.f32.gmra.mrb[0].mxu0 %v603
        %v1596 = vpop.f32.mrb[0].mxu0
        %v1597 = vadd.f32 0.0, %v1596
        %v1598 = vpop.f32.mrb[0].mxu0
        %v1599 = vadd.f32 0.0, %v1598
        %1600 = vmatprep.mubr.f32.mxu0 %v611
        %1601 = vmatmul.mubr.f32.gmra.mrb[0].mxu0 %v609
        %v1602 = vpop.f32.mrb[0].mxu0
        %v1603 = vadd.f32 0.0, %v1602
        %v1604 = vpop.f32.mrb[0].mxu0
        %v1605 = vadd.f32 0.0, %v1604
        %1606 = vmatprep.mubr.f32.mxu0 %v617
        %1607 = vmatmul.mubr.f32.gmra.mrb[0].mxu0 %v615
        %v1608 = vpop.f32.mrb[0].mxu0
        %v1609 = vadd.f32 0.0, %v1608
        %v1610 = vpop.f32.mrb[0].mxu0
        %v1611 = vadd.f32 0.0, %v1610
        %1612 = vmatprep.mubr.f32.mxu0 %v623
        %1613 = vmatmul.mubr.f32.gmra.mrb[0].mxu0 %v621
        %v1614 = vpop.f32.mrb[0].mxu0
        %v1615 = vadd.f32 0.0, %v1614
        %v1616 = vpop.f32.mrb[0].mxu0
        %v1617 = vadd.f32 0.0, %v1616
        %1618 = vdwg.mxu0
        %s1619 = sld [smem:[#allocation2]]
        %v1620 = vstv %s1619
        %v1621 = vmul.f32 %v1620, %v1597
        %v1622 = vmul.f32 %v1620, %v1599
        %v1623 = vmul.f32 %v1620, %v1603
        %v1624 = vmul.f32 %v1620, %v1605
        %v1625 = vmul.f32 %v1620, %v1609
        %v1626 = vmul.f32 %v1620, %v1611
        %v1627 = vmul.f32 %v1620, %v1615
        %v1628 = vmul.f32 %v1620, %v1617
        %v1629 = vadd.f32 %v1621, %v325
        %v1630 = vadd.f32 %v1622, %v326
        %v1631 = vadd.f32 %v1623, %v327
        %v1632 = vadd.f32 %v1624, %v328
        %v1633 = vadd.f32 %v1625, %v329
        %v1634 = vadd.f32 %v1626, %v330
        %v1635 = vadd.f32 %v1627, %v331
        %v1636 = vadd.f32 %v1628, %v332
        %1637 = vst [vmem:[%s324] sm:$0xff] %v1629
        %1638 = vst [vmem:[%s324 + $0x8] sm:$0xff] %v1630
        %1639 = vst [vmem:[%s324 + $0x10] sm:$0xff] %v1631
        %1640 = vst [vmem:[%s324 + $0x18] sm:$0xff] %v1632
        %1641 = vst [vmem:[%s324 + $0x20] sm:$0xff] %v1633
        %1642 = vst [vmem:[%s324 + $0x28] sm:$0xff] %v1634
        %1643 = vst [vmem:[%s324 + $0x30] sm:$0xff] %v1635
        %1644 = vst [vmem:[%s324 + $0x38] sm:$0xff] %v1636
        %s1645 = sand.u32 %s207, 1
        %s1646 = scalar_lea.sflag [#allocation5], %s1645
        %s1647 = sand.u32 %s207, 1
        %s1648 = smul.addr %s1647, 64
        %s1649 = scalar_lea.vmem [#allocation6], %s1648
        // Predicated region
        $region57: #{tpu_custom_call.1} parent=51 // pred_check
          %p1650 = pneg %p217
        $region58: #{tpu_custom_call.1} parent=51 // pred_check_branch
          %1652 = sbr.rel (%p1650) target = $region60
        $region59: #{tpu_custom_call.1} parent=51 // pred_region
          %s1654 = ssub.s32 1024, 1024
          %1655 = vsyncadd %s1646, %s1654
          %s1656 = smul.addr %s26, 8
          %s1657 = smul.addr %s1656, 128
          %s1658 = scalar_lea.hbm %s8, %s1657
          %s1659 = sshll.u32 %s1649, 4
          %s1660 = int_to_ptr.vmem [resolvable:$true] %s1659
          %1665 = dma.vmem_to_hbm [thread:$0]  %s1660, 1024, %s1658, %s1646, 256, 256, 16
        $region60: #{tpu_custom_call.1} parent=51 // pred_fallthru
          _
      $region52: #{tpu_custom_call.1} parent=5 // pred_fallthru
        _
      %p1666 = scmp.le.s32.totalorder 2, %s21
      // Predicated region
      $region61: #{tpu_custom_call.1} parent=5 // pred_check
        %p1667 = pneg %p1666
      $region62: #{tpu_custom_call.1} parent=5 // pred_check_branch
        %1669 = sbr.rel (%p1667) target = $region64
      $region63: #{tpu_custom_call.1} parent=5 // pred_region
        %s1670 = ssub.s32 %s21, 2
        // Predicated region
        $region65: #{tpu_custom_call.1} parent=63 // pred_check
          %p1671 = pneg %p223
        $region66: #{tpu_custom_call.1} parent=63 // pred_check_branch
          %1673 = sbr.rel (%p1671) target = $region68
        $region67: #{tpu_custom_call.1} parent=63 // pred_region
          %s1674 = sand.u32 %s208, 1
          %s1675 = scalar_lea.sflag [#allocation5], %s1674
          %s1676 = sand.u32 %s208, 1
          %s1677 = smul.addr %s1676, 64
          %s1678 = scalar_lea.vmem [#allocation6], %s1677
          %1679 = dma.done %s1675, 1024
        $region68: #{tpu_custom_call.1} parent=63 // pred_fallthru
          _
      $region64: #{tpu_custom_call.1} parent=5 // pred_fallthru
        _
    $region6: #{tpu_custom_call.1} parent=1 // loop_footer
      %s25 = sadd.s32 1, %s21
    $region7: #{tpu_custom_call.1} parent=1 // loop_footer_branch
      %20 = sbr.rel target = $region3
    $region8: #{tpu_custom_call.1} parent=1 // loop_exit
      _
    %1680 = vsyncpa [#allocation4], 1
    %s1681 = scalar_lea.sflag [#allocation4], 1
    %1682 = vsyncpa %s1681, 1
    %1683 = vsyncpa [#allocation5], 1
    %s1684 = scalar_lea.sflag [#allocation5], 1
    %1685 = vsyncpa %s1684, 1

</llo_original>
